<compile_context>
chip_gen: v7x
topology: tpu7x:2x2x1
jax: 0.10.0
libtpu: 0.0.40
codegen_flags: <defaults>
</compile_context>

<pallas_src>
import functools

import jax
import jax.numpy as jnp
from jax.experimental import pallas as pl
from jax.experimental.pallas import tpu as pltpu

_LANE = 128


def _round_up(n, m):
    return ((n + m - 1) // m) * m


def _inverted_residual_kernel(x_ref, w1_ref, b1_ref, wdw_ref, b2_ref,
                              w3_ref, b3_ref, o_ref, hpad_ref,
                              *, stride, use_shortcut, expand, has_bottom_pad):
    # x_ref:    (1, H+2, W, Cin)   bf16, H zero-padded by one row top/bottom
    # w1_ref:   (Cin, Ch)          bf16 (BN scale folded)  [unused if not expand]
    # b1_ref:   (1, Ch)            f32
    # wdw_ref:  (3, 3, Ch)         f32  (BN scale folded)
    # b2_ref:   (1, Ch)            f32
    # w3_ref:   (Ch, Cout)         bf16 (BN scale folded)
    # b3_ref:   (1, Cout)          f32
    # o_ref:    (1, TH, Wo, Cout)  bf16
    # hpad_ref: (L, W+2, Ch)       bf16 scratch, L = (TH-1)*stride + 3
    r = pl.program_id(1)
    W, Cin = x_ref.shape[2], x_ref.shape[3]
    L, Ch = hpad_ref.shape[0], hpad_ref.shape[2]
    TH, Wo, Cout = o_ref.shape[1], o_ref.shape[2], o_ref.shape[3]

    # Rows of the (H+2)-padded input needed by this tile of output rows.
    row_step = TH * stride
    row0 = pl.multiple_of(r * row_step, row_step)
    xw = x_ref[0, pl.ds(row0, L), :, :]                     # (L, W, Cin) bf16

    # --- expand: 1x1 conv (BN folded) + bias + ReLU6 (bf16 MXU, f32 math) ---
    if expand:
        h = jnp.dot(xw.reshape(L * W, Cin), w1_ref[...],
                    preferred_element_type=jnp.float32)     # (L*W, Ch) f32
        h = jnp.clip(h + b1_ref[0][None, :], 0.0, 6.0)
        h = h.reshape(L, W, Ch).astype(jnp.bfloat16)
    else:
        h = xw                                              # hidden == in_channel

    # --- build the zero-padded hidden window in the bf16 VMEM scratch ---
    hpad_ref[0:L, 1:W + 1, :] = h
    zcol = jnp.zeros((L, 1, Ch), jnp.bfloat16)
    hpad_ref[:, 0:1, :] = zcol
    hpad_ref[:, W + 1:W + 2, :] = zcol
    zrow = jnp.zeros((1, W + 2, Ch), jnp.bfloat16)

    @pl.when(r == 0)                 # window contains the fake row above the image
    def _():
        hpad_ref[0:1, :, :] = zrow

    if has_bottom_pad:               # static: last tile touches the fake bottom row
        @pl.when(r == pl.num_programs(1) - 1)
        def _():
            hpad_ref[L - 1:L, :, :] = zrow

    # --- depthwise 3x3 (BN folded) + bias + ReLU6: 9 ref-sliced taps ---
    wdw = wdw_ref[...]                                      # (3, 3, Ch) f32
    b2 = b2_ref[0]                                          # (Ch,) f32
    acc = None
    for kh in range(3):
        for kw in range(3):
            if stride == 1:
                win = hpad_ref[pl.ds(kh, TH), pl.ds(kw, Wo), :]
            else:
                win = hpad_ref[pl.ds(kh, TH, stride=stride),
                               pl.ds(kw, Wo, stride=stride), :]
            tap = win.astype(jnp.float32) * wdw[kh, kw, :][None, None, :]
            acc = (tap + b2[None, None, :]) if acc is None else (acc + tap)
    acc = jnp.clip(acc, 0.0, 6.0)                           # (TH, Wo, Ch) f32

    # --- project: 1x1 conv (BN folded) + bias ---
    out = jnp.dot(acc.astype(jnp.bfloat16).reshape(TH * Wo, Ch), w3_ref[...],
                  preferred_element_type=jnp.float32)       # (TH*Wo, Cout) f32
    out = (out + b3_ref[0][None, :]).reshape(TH, Wo, Cout)

    # --- residual shortcut (stride == 1, Cin == Cout) ---
    if use_shortcut:
        out = out + xw[1:TH + 1].astype(jnp.float32)        # interior rows of window

    o_ref[0] = out.astype(o_ref.dtype)


def _pick_tile_rows(Ho, W, Ch, stride, max_rows=8, budget_bytes=24 << 20):
    """Largest divisor of Ho (<= max_rows) whose per-tile intermediates fit."""
    Wo = (W - 1) // stride + 1

    def tile_bytes(th):
        L = (th - 1) * stride + 3
        return (L * (W + 2) * Ch * 2        # bf16 padded-hidden scratch
                + L * W * Ch * 4            # f32 hidden value from expand matmul
                + 2 * th * Wo * Ch * 4)     # f32 depthwise accumulator + slack

    for th in range(min(Ho, max_rows), 0, -1):
        if Ho % th == 0 and tile_bytes(th) <= budget_bytes:
            return th
    return 1


def _vmem_limit_bytes():
    # ~3/4 of the chip's VMEM (64 MiB on v7x, 128 MiB on v5e/v6e), capped.
    try:
        cap = int(pltpu.get_tpu_info().vmem_capacity_bytes)
        return min(cap * 3 // 4, 100 * 1024 * 1024)
    except Exception:
        return 64 * 1024 * 1024


def prepare_params(params, *, expand_ratio):
    """Fold eval-mode BN into the conv weights, pad the hidden-channel axis to
    a lane multiple and pre-cast MXU operands to bf16.  Done once at init."""
    expand = expand_ratio != 1
    hidden = params["wdw"].shape[2]
    in_c = params["w1"].shape[0] if expand else hidden
    Chp = _round_up(hidden, _LANE) if expand else hidden
    pad_h = Chp - hidden

    wdw = params["wdw"] * params["s2"][0][None, None, :]
    w3 = params["w3"] * params["s3"][0][None, :]

    prepared = dict(
        expand=expand,
        wdw=jnp.pad(wdw, ((0, 0), (0, 0), (0, pad_h))).astype(jnp.float32),
        b2=jnp.pad(params["b2"], ((0, 0), (0, pad_h))).astype(jnp.float32),
        w3=jnp.pad(w3, ((0, pad_h), (0, 0))).astype(jnp.bfloat16),
        b3=params["b3"].astype(jnp.float32),
    )
    if expand:
        w1 = params["w1"] * params["s1"][0][None, :]
        prepared["w1"] = jnp.pad(w1, ((0, 0), (0, pad_h))).astype(jnp.bfloat16)
        prepared["b1"] = jnp.pad(params["b1"], ((0, 0), (0, pad_h))).astype(jnp.float32)
    else:
        prepared["w1"] = jnp.zeros((in_c, Chp), jnp.bfloat16)   # unused
        prepared["b1"] = jnp.zeros((1, Chp), jnp.float32)       # unused
    return prepared


def inverted_residual_nhwc(x_nhwc, prepared, *, stride):
    """Fused InvertedResidual forward.  x_nhwc: (B, H, W, Cin) bf16 NHWC (the
    layout/dtype activations keep between blocks).  Returns bf16 NHWC."""
    B, H, W, in_c = x_nhwc.shape
    out_c = prepared["w3"].shape[1]
    Ch = prepared["wdw"].shape[2]
    use_shortcut = (stride == 1 and in_c == out_c)

    Ho = (H - 1) // stride + 1
    Wo = (W - 1) // stride + 1
    TH = _pick_tile_rows(Ho, W, Ch, stride)
    NR = Ho // TH
    L = (TH - 1) * stride + 3
    has_bottom_pad = ((Ho - 1) * stride == H - 1)

    # One-row zero halo on H so every row tile's input window is a static-size,
    # in-bounds slice.  TODO(synk): fold this pad into the producing block.
    xpad = jnp.pad(x_nhwc, ((0, 0), (1, 1), (0, 0), (0, 0)))

    kernel = functools.partial(
        _inverted_residual_kernel, stride=stride, use_shortcut=use_shortcut,
        expand=prepared["expand"], has_bottom_pad=has_bottom_pad)

    return pl.pallas_call(
        kernel,
        out_shape=jax.ShapeDtypeStruct((B, Ho, Wo, out_c), jnp.bfloat16),
        grid_spec=pltpu.PrefetchScalarGridSpec(
            num_scalar_prefetch=0,
            grid=(B, NR),
            in_specs=[
                pl.BlockSpec((1, H + 2, W, in_c), lambda b, r: (b, 0, 0, 0)),
                pl.BlockSpec(prepared["w1"].shape, lambda b, r: (0, 0)),
                pl.BlockSpec(prepared["b1"].shape, lambda b, r: (0, 0)),
                pl.BlockSpec((3, 3, Ch), lambda b, r: (0, 0, 0)),
                pl.BlockSpec((1, Ch), lambda b, r: (0, 0)),
                pl.BlockSpec((Ch, out_c), lambda b, r: (0, 0)),
                pl.BlockSpec((1, out_c), lambda b, r: (0, 0)),
            ],
            out_specs=pl.BlockSpec((1, TH, Wo, out_c), lambda b, r: (b, r, 0, 0)),
            scratch_shapes=[pltpu.VMEM((L, W + 2, Ch), jnp.bfloat16)],
        ),
        compiler_params=pltpu.CompilerParams(
            dimension_semantics=("parallel", "parallel"),
            vmem_limit_bytes=_vmem_limit_bytes()),
    )(xpad, prepared["w1"], prepared["b1"], prepared["wdw"], prepared["b2"],
      prepared["w3"], prepared["b3"])


def inverted_residual(x_nchw, prepared, *, stride):
    """NCHW f32 convenience wrapper (PyTorch parity for the demo).  In a full
    network the NHWC/bf16 path above is chained directly between blocks."""
    x = jnp.transpose(x_nchw, (0, 2, 3, 1)).astype(jnp.bfloat16)
    y = inverted_residual_nhwc(x, prepared, stride=stride)
    return jnp.transpose(y, (0, 3, 1, 2)).astype(x_nchw.dtype)


def _fold_bn(gamma, beta, mean, var, eps=1e-5):
    scale = gamma / jnp.sqrt(var + eps)
    bias = beta - mean * scale
    return scale[None, :], bias[None, :]


def make_params(key, in_c, out_c, expand_ratio):
    """Deterministic synthetic parameters matching the PyTorch module shapes."""
    hidden = in_c * expand_ratio
    ks = jax.random.split(key, 6)

    def bn_params(k, c):
        k1, k2, k3, k4 = jax.random.split(k, 4)
        gamma = jax.random.uniform(k1, (c,), jnp.float32, 0.5, 1.5)
        beta = jax.random.normal(k2, (c,), jnp.float32) * 0.1
        mean = jax.random.normal(k3, (c,), jnp.float32) * 0.1
        var = jax.random.uniform(k4, (c,), jnp.float32, 0.5, 1.5)
        return gamma, beta, mean, var

    # expand 1x1 conv: PyTorch weight (hidden, in_c, 1, 1) -> (in_c, hidden)
    w1 = jax.random.normal(ks[0], (in_c, hidden), jnp.float32) * 0.2
    s1, b1 = _fold_bn(*bn_params(ks[1], hidden))
    # depthwise 3x3 conv: PyTorch weight (hidden, 1, 3, 3) -> (3, 3, hidden)
    wdw = jax.random.normal(ks[2], (3, 3, hidden), jnp.float32) * 0.2
    s2, b2 = _fold_bn(*bn_params(ks[3], hidden))
    # project 1x1 conv: PyTorch weight (out_c, hidden, 1, 1) -> (hidden, out_c)
    w3 = jax.random.normal(ks[4], (hidden, out_c), jnp.float32) * 0.2
    s3, b3 = _fold_bn(*bn_params(ks[5], out_c))

    return dict(w1=w1, s1=s1, b1=b1, wdw=wdw, s2=s2, b2=b2,
                w3=w3, s3=s3, b3=b3)


def reference_nchw(x_nchw, p, *, stride, expand_ratio):
    """Pure-JAX f32 reference (same math, eval-mode BatchNorm)."""
    in_c = x_nchw.shape[1]
    out_c = p["w3"].shape[1]
    use_shortcut = (stride == 1 and in_c == out_c)
    x = jnp.transpose(x_nchw, (0, 2, 3, 1))                 # NHWC
    B, H, W, _ = x.shape
    h = x
    if expand_ratio != 1:
        h = jnp.einsum('bhwc,cd->bhwd', x, p["w1"])
        h = jnp.clip(h * p["s1"][0] + p["b1"][0], 0.0, 6.0)
    Ho = (H + 2 - 3) // stride + 1
    Wo = (W + 2 - 3) // stride + 1
    hp = jnp.pad(h, ((0, 0), (1, 1), (1, 1), (0, 0)))
    acc = jnp.zeros((B, Ho, Wo, h.shape[-1]), jnp.float32)
    for kh in range(3):
        for kw in range(3):
            win = hp[:, kh:kh + (Ho - 1) * stride + 1:stride,
                     kw:kw + (Wo - 1) * stride + 1:stride, :]
            acc = acc + win * p["wdw"][kh, kw, :]
    acc = jnp.clip(acc * p["s2"][0] + p["b2"][0], 0.0, 6.0)
    out = jnp.einsum('bhwc,cd->bhwd', acc, p["w3"]) * p["s3"][0] + p["b3"][0]
    if use_shortcut:
        out = out + x
    return jnp.transpose(out, (0, 3, 1, 2))


if __name__ == "__main__":
    key = jax.random.PRNGKey(0)
    kx, kp, kp2 = jax.random.split(key, 3)

    # Config 1: stride=1, expand_ratio=2, in==out -> residual shortcut; the
    # output-row grid has 2 tiles per image, exercising the halo logic.
    B, IN_C, OUT_C, H, W = 2, 4, 4, 16, 16
    STRIDE, EXPAND_RATIO = 1, 2
    x = jax.random.normal(kx, (B, IN_C, H, W), jnp.float32)
    params = make_params(kp, IN_C, OUT_C, EXPAND_RATIO)
    prepared = prepare_params(params, expand_ratio=EXPAND_RATIO)

    y = jax.block_until_ready(inverted_residual(x, prepared, stride=STRIDE))
    y_ref = reference_nchw(x, params, stride=STRIDE, expand_ratio=EXPAND_RATIO)
    assert y.shape == (B, OUT_C, H, W)
    # bf16 activations in HBM + bf16 MXU operands (f32 accumulation) vs f32 ref.
    assert jnp.allclose(y, y_ref, rtol=2e-2, atol=8e-2), "mismatch vs reference (cfg1)"

    # Config 2: stride=2, channel change -> no shortcut, strided depthwise taps.
    OUT_C2, STRIDE2 = 8, 2
    params2 = make_params(kp2, IN_C, OUT_C2, EXPAND_RATIO)
    prepared2 = prepare_params(params2, expand_ratio=EXPAND_RATIO)
    y2 = jax.block_until_ready(inverted_residual(x, prepared2, stride=STRIDE2))
    y2_ref = reference_nchw(x, params2, stride=STRIDE2, expand_ratio=EXPAND_RATIO)
    Ho2 = (H - 1) // STRIDE2 + 1
    assert y2.shape == (B, OUT_C2, Ho2, Ho2)
    assert jnp.allclose(y2, y2_ref, rtol=2e-2, atol=8e-2), "mismatch vs reference (cfg2)"

    print("KERNEL_OK")
</pallas_src>

<mosaic_0001>
module attributes {stable_mosaic.version = 11 : i64} {
  func.func @_inverted_residual_kernel(%arg0: i32, %arg1: i32, %arg2: memref<1x18x16x4xbf16, #tpu.memory_space<vmem>>, %arg3: memref<4x128xbf16, #tpu.memory_space<vmem>>, %arg4: memref<1x128xf32, #tpu.memory_space<vmem>>, %arg5: memref<3x3x128xf32, #tpu.memory_space<vmem>>, %arg6: memref<1x128xf32, #tpu.memory_space<vmem>>, %arg7: memref<128x4xbf16, #tpu.memory_space<vmem>>, %arg8: memref<1x4xf32, #tpu.memory_space<vmem>>, %arg9: memref<1x8x16x4xbf16, #tpu.memory_space<vmem>>, %arg10: memref<10x18x128xbf16, #tpu.memory_space<vmem>>) attributes {dimension_semantics = [#tpu.dimension_semantics<parallel>, #tpu.dimension_semantics<parallel>], iteration_bounds = array<i64: 2, 2>, scalar_prefetch = 0 : i64, scratch_operands = 1 : i64, tpu.core_type = #tpu.core_type<tc>, window_params = [{transform_indices = @transform_0, window_bounds = array<i64: 1, 18, 16, 4>}, {pipeline_mode = #tpu.pipeline_mode<synchronous>, transform_indices = @transform_1, window_bounds = array<i64: 4, 128>}, {pipeline_mode = #tpu.pipeline_mode<synchronous>, transform_indices = @transform_2, window_bounds = array<i64: 1, 128>}, {pipeline_mode = #tpu.pipeline_mode<synchronous>, transform_indices = @transform_3, window_bounds = array<i64: 3, 3, 128>}, {pipeline_mode = #tpu.pipeline_mode<synchronous>, transform_indices = @transform_4, window_bounds = array<i64: 1, 128>}, {pipeline_mode = #tpu.pipeline_mode<synchronous>, transform_indices = @transform_5, window_bounds = array<i64: 128, 4>}, {pipeline_mode = #tpu.pipeline_mode<synchronous>, transform_indices = @transform_6, window_bounds = array<i64: 1, 4>}, {transform_indices = @transform_7, window_bounds = array<i64: 1, 8, 16, 4>}]} {
    %c8_i32 = arith.constant 8 : i32
    %0 = arith.muli %arg1, %c8_i32 : i32
    %1 = tpu.assume_multiple %0, 8 : i32
    %c0 = arith.constant 0 : index
    %2 = arith.index_cast %1 : i32 to index
    %c0_0 = arith.constant 0 : index
    %c0_1 = arith.constant 0 : index
    %3 = vector.load %arg2[%c0, %2, %c0_0, %c0_1] : memref<1x18x16x4xbf16, #tpu.memory_space<vmem>>, vector<1x10x16x4xbf16>
    %4 = vector.shape_cast %3 : vector<1x10x16x4xbf16> to vector<10x16x4xbf16>
    %5 = vector.shape_cast %4 : vector<10x16x4xbf16> to vector<160x4xbf16>
    %c0_2 = arith.constant 0 : index
    %c0_3 = arith.constant 0 : index
    %6 = vector.load %arg3[%c0_2, %c0_3] : memref<4x128xbf16, #tpu.memory_space<vmem>>, vector<4x128xbf16>
    %cst = arith.constant dense<0.000000e+00> : vector<160x128xf32>
    %7 = tpu.matmul %5, %6, %cst {dimension_numbers = #tpu.dot_dimension_numbers<[1], [0], [0], [1], [0, 0, 1, 1], [], []>} : vector<160x4xbf16>, vector<4x128xbf16>, vector<160x128xf32> -> vector<160x128xf32>
    %c0_4 = arith.constant 0 : index
    %c0_5 = arith.constant 0 : index
    %8 = vector.load %arg4[%c0_4, %c0_5] : memref<1x128xf32, #tpu.memory_space<vmem>>, vector<1x128xf32>
    %9 = vector.shape_cast %8 : vector<1x128xf32> to vector<128xf32>
    %10 = vector.shape_cast %9 : vector<128xf32> to vector<1x128xf32>
    %11 = vector.broadcast %10 : vector<1x128xf32> to vector<160x128xf32>
    %12 = arith.addf %7, %11 : vector<160x128xf32>
    %cst_6 = arith.constant 0.000000e+00 : f32
    %cst_7 = arith.constant 6.000000e+00 : f32
    %13 = vector.broadcast %cst_6 : f32 to vector<160x128xf32>
    %14 = arith.maximumf %13, %12 : vector<160x128xf32>
    %15 = vector.broadcast %cst_7 : f32 to vector<160x128xf32>
    %16 = arith.minimumf %15, %14 : vector<160x128xf32>
    %17 = vector.shape_cast %16 : vector<160x128xf32> to vector<10x16x128xf32>
    %18 = arith.truncf %17 : vector<10x16x128xf32> to vector<10x16x128xbf16>
    %c0_8 = arith.constant 0 : index
    %c1 = arith.constant 1 : index
    %c0_9 = arith.constant 0 : index
    %19 = vector.load %arg10[%c0_8, %c1, %c0_9] : memref<10x18x128xbf16, #tpu.memory_space<vmem>>, vector<10x16x128xbf16>
    tpu.vector_store %arg10[%c0_8, %c1, %c0_9], %18 {strides = array<i32>} : memref<10x18x128xbf16, #tpu.memory_space<vmem>>, vector<10x16x128xbf16>,
    %cst_10 = arith.constant 0.000000e+00 : bf16
    %20 = vector.broadcast %cst_10 : bf16 to vector<10x1x128xbf16>
    %c0_11 = arith.constant 0 : index
    %c0_12 = arith.constant 0 : index
    %c0_13 = arith.constant 0 : index
    %21 = vector.load %arg10[%c0_11, %c0_12, %c0_13] : memref<10x18x128xbf16, #tpu.memory_space<vmem>>, vector<10x1x128xbf16>
    tpu.vector_store %arg10[%c0_11, %c0_12, %c0_13], %20 {strides = array<i32>} : memref<10x18x128xbf16, #tpu.memory_space<vmem>>, vector<10x1x128xbf16>,
    %c0_14 = arith.constant 0 : index
    %c17 = arith.constant 17 : index
    %c0_15 = arith.constant 0 : index
    %22 = vector.load %arg10[%c0_14, %c17, %c0_15] : memref<10x18x128xbf16, #tpu.memory_space<vmem>>, vector<10x1x128xbf16>
    tpu.vector_store %arg10[%c0_14, %c17, %c0_15], %20 {strides = array<i32>} : memref<10x18x128xbf16, #tpu.memory_space<vmem>>, vector<10x1x128xbf16>,
    %cst_16 = arith.constant 0.000000e+00 : bf16
    %23 = vector.broadcast %cst_16 : bf16 to vector<1x18x128xbf16>
    %c0_i32 = arith.constant 0 : i32
    %24 = arith.cmpi eq, %arg1, %c0_i32 : i32
    %25 = arith.extui %24 : i1 to i32
    %c0_i32_17 = arith.constant 0 : i32
    %26 = arith.cmpi ne, %25, %c0_i32_17 : i32
    scf.if %26 {
      %c0_61 = arith.constant 0 : index
      %c0_62 = arith.constant 0 : index
      %c0_63 = arith.constant 0 : index
      %128 = vector.load %arg10[%c0_61, %c0_62, %c0_63] : memref<10x18x128xbf16, #tpu.memory_space<vmem>>, vector<1x18x128xbf16>
      tpu.vector_store %arg10[%c0_61, %c0_62, %c0_63], %23 {strides = array<i32>} : memref<10x18x128xbf16, #tpu.memory_space<vmem>>, vector<1x18x128xbf16>,
    } else {
    }
    %c1_i32 = arith.constant 1 : i32
    %27 = arith.cmpi eq, %arg1, %c1_i32 : i32
    %28 = arith.extui %27 : i1 to i32
    %c0_i32_18 = arith.constant 0 : i32
    %29 = arith.cmpi ne, %28, %c0_i32_18 : i32
    scf.if %29 {
      %c9 = arith.constant 9 : index
      %c0_61 = arith.constant 0 : index
      %c0_62 = arith.constant 0 : index
      %128 = vector.load %arg10[%c9, %c0_61, %c0_62] : memref<10x18x128xbf16, #tpu.memory_space<vmem>>, vector<1x18x128xbf16>
      tpu.vector_store %arg10[%c9, %c0_61, %c0_62], %23 {strides = array<i32>} : memref<10x18x128xbf16, #tpu.memory_space<vmem>>, vector<1x18x128xbf16>,
    } else {
    }
    %c0_19 = arith.constant 0 : index
    %c0_20 = arith.constant 0 : index
    %c0_21 = arith.constant 0 : index
    %30 = vector.load %arg5[%c0_19, %c0_20, %c0_21] : memref<3x3x128xf32, #tpu.memory_space<vmem>>, vector<3x3x128xf32>
    %c0_22 = arith.constant 0 : index
    %c0_23 = arith.constant 0 : index
    %31 = vector.load %arg6[%c0_22, %c0_23] : memref<1x128xf32, #tpu.memory_space<vmem>>, vector<1x128xf32>
    %32 = vector.shape_cast %31 : vector<1x128xf32> to vector<128xf32>
    %c0_24 = arith.constant 0 : index
    %c0_25 = arith.constant 0 : index
    %c0_26 = arith.constant 0 : index
    %33 = vector.load %arg10[%c0_24, %c0_25, %c0_26] : memref<10x18x128xbf16, #tpu.memory_space<vmem>>, vector<8x16x128xbf16>
    %34 = arith.extf %33 : vector<8x16x128xbf16> to vector<8x16x128xf32>
    %35 = vector.extract_strided_slice %30 {offsets = [0, 0, 0], sizes = [1, 1, 128], strides = [1, 1, 1]} : vector<3x3x128xf32> to vector<1x1x128xf32>
    %36 = vector.shape_cast %35 : vector<1x1x128xf32> to vector<128xf32>
    %37 = vector.shape_cast %36 : vector<128xf32> to vector<1x1x128xf32>
    %38 = vector.broadcast %37 : vector<1x1x128xf32> to vector<8x16x128xf32>
    %39 = arith.mulf %34, %38 : vector<8x16x128xf32>
    %40 = vector.shape_cast %32 : vector<128xf32> to vector<1x1x128xf32>
    %41 = vector.broadcast %40 : vector<1x1x128xf32> to vector<8x16x128xf32>
    %42 = arith.addf %39, %41 : vector<8x16x128xf32>
    %c0_27 = arith.constant 0 : index
    %c1_28 = arith.constant 1 : index
    %c0_29 = arith.constant 0 : index
    %43 = vector.load %arg10[%c0_27, %c1_28, %c0_29] : memref<10x18x128xbf16, #tpu.memory_space<vmem>>, vector<8x16x128xbf16>
    %44 = arith.extf %43 : vector<8x16x128xbf16> to vector<8x16x128xf32>
    %45 = vector.extract_strided_slice %30 {offsets = [0, 1, 0], sizes = [1, 1, 128], strides = [1, 1, 1]} : vector<3x3x128xf32> to vector<1x1x128xf32>
    %46 = vector.shape_cast %45 : vector<1x1x128xf32> to vector<128xf32>
    %47 = vector.shape_cast %46 : vector<128xf32> to vector<1x1x128xf32>
    %48 = vector.broadcast %47 : vector<1x1x128xf32> to vector<8x16x128xf32>
    %49 = arith.mulf %44, %48 : vector<8x16x128xf32>
    %50 = arith.addf %42, %49 : vector<8x16x128xf32>
    %c0_30 = arith.constant 0 : index
    %c2 = arith.constant 2 : index
    %c0_31 = arith.constant 0 : index
    %51 = vector.load %arg10[%c0_30, %c2, %c0_31] : memref<10x18x128xbf16, #tpu.memory_space<vmem>>, vector<8x16x128xbf16>
    %52 = arith.extf %51 : vector<8x16x128xbf16> to vector<8x16x128xf32>
    %53 = vector.extract_strided_slice %30 {offsets = [0, 2, 0], sizes = [1, 1, 128], strides = [1, 1, 1]} : vector<3x3x128xf32> to vector<1x1x128xf32>
    %54 = vector.shape_cast %53 : vector<1x1x128xf32> to vector<128xf32>
    %55 = vector.shape_cast %54 : vector<128xf32> to vector<1x1x128xf32>
    %56 = vector.broadcast %55 : vector<1x1x128xf32> to vector<8x16x128xf32>
    %57 = arith.mulf %52, %56 : vector<8x16x128xf32>
    %58 = arith.addf %50, %57 : vector<8x16x128xf32>
    %c1_32 = arith.constant 1 : index
    %c0_33 = arith.constant 0 : index
    %c0_34 = arith.constant 0 : index
    %59 = vector.load %arg10[%c1_32, %c0_33, %c0_34] : memref<10x18x128xbf16, #tpu.memory_space<vmem>>, vector<8x16x128xbf16>
    %60 = arith.extf %59 : vector<8x16x128xbf16> to vector<8x16x128xf32>
    %61 = vector.extract_strided_slice %30 {offsets = [1, 0, 0], sizes = [1, 1, 128], strides = [1, 1, 1]} : vector<3x3x128xf32> to vector<1x1x128xf32>
    %62 = vector.shape_cast %61 : vector<1x1x128xf32> to vector<128xf32>
    %63 = vector.shape_cast %62 : vector<128xf32> to vector<1x1x128xf32>
    %64 = vector.broadcast %63 : vector<1x1x128xf32> to vector<8x16x128xf32>
    %65 = arith.mulf %60, %64 : vector<8x16x128xf32>
    %66 = arith.addf %58, %65 : vector<8x16x128xf32>
    %c1_35 = arith.constant 1 : index
    %c1_36 = arith.constant 1 : index
    %c0_37 = arith.constant 0 : index
    %67 = vector.load %arg10[%c1_35, %c1_36, %c0_37] : memref<10x18x128xbf16, #tpu.memory_space<vmem>>, vector<8x16x128xbf16>
    %68 = arith.extf %67 : vector<8x16x128xbf16> to vector<8x16x128xf32>
    %69 = vector.extract_strided_slice %30 {offsets = [1, 1, 0], sizes = [1, 1, 128], strides = [1, 1, 1]} : vector<3x3x128xf32> to vector<1x1x128xf32>
    %70 = vector.shape_cast %69 : vector<1x1x128xf32> to vector<128xf32>
    %71 = vector.shape_cast %70 : vector<128xf32> to vector<1x1x128xf32>
    %72 = vector.broadcast %71 : vector<1x1x128xf32> to vector<8x16x128xf32>
    %73 = arith.mulf %68, %72 : vector<8x16x128xf32>
    %74 = arith.addf %66, %73 : vector<8x16x128xf32>
    %c1_38 = arith.constant 1 : index
    %c2_39 = arith.constant 2 : index
    %c0_40 = arith.constant 0 : index
    %75 = vector.load %arg10[%c1_38, %c2_39, %c0_40] : memref<10x18x128xbf16, #tpu.memory_space<vmem>>, vector<8x16x128xbf16>
    %76 = arith.extf %75 : vector<8x16x128xbf16> to vector<8x16x128xf32>
    %77 = vector.extract_strided_slice %30 {offsets = [1, 2, 0], sizes = [1, 1, 128], strides = [1, 1, 1]} : vector<3x3x128xf32> to vector<1x1x128xf32>
    %78 = vector.shape_cast %77 : vector<1x1x128xf32> to vector<128xf32>
    %79 = vector.shape_cast %78 : vector<128xf32> to vector<1x1x128xf32>
    %80 = vector.broadcast %79 : vector<1x1x128xf32> to vector<8x16x128xf32>
    %81 = arith.mulf %76, %80 : vector<8x16x128xf32>
    %82 = arith.addf %74, %81 : vector<8x16x128xf32>
    %c2_41 = arith.constant 2 : index
    %c0_42 = arith.constant 0 : index
    %c0_43 = arith.constant 0 : index
    %83 = vector.load %arg10[%c2_41, %c0_42, %c0_43] : memref<10x18x128xbf16, #tpu.memory_space<vmem>>, vector<8x16x128xbf16>
    %84 = arith.extf %83 : vector<8x16x128xbf16> to vector<8x16x128xf32>
    %85 = vector.extract_strided_slice %30 {offsets = [2, 0, 0], sizes = [1, 1, 128], strides = [1, 1, 1]} : vector<3x3x128xf32> to vector<1x1x128xf32>
    %86 = vector.shape_cast %85 : vector<1x1x128xf32> to vector<128xf32>
    %87 = vector.shape_cast %86 : vector<128xf32> to vector<1x1x128xf32>
    %88 = vector.broadcast %87 : vector<1x1x128xf32> to vector<8x16x128xf32>
    %89 = arith.mulf %84, %88 : vector<8x16x128xf32>
    %90 = arith.addf %82, %89 : vector<8x16x128xf32>
    %c2_44 = arith.constant 2 : index
    %c1_45 = arith.constant 1 : index
    %c0_46 = arith.constant 0 : index
    %91 = vector.load %arg10[%c2_44, %c1_45, %c0_46] : memref<10x18x128xbf16, #tpu.memory_space<vmem>>, vector<8x16x128xbf16>
    %92 = arith.extf %91 : vector<8x16x128xbf16> to vector<8x16x128xf32>
    %93 = vector.extract_strided_slice %30 {offsets = [2, 1, 0], sizes = [1, 1, 128], strides = [1, 1, 1]} : vector<3x3x128xf32> to vector<1x1x128xf32>
    %94 = vector.shape_cast %93 : vector<1x1x128xf32> to vector<128xf32>
    %95 = vector.shape_cast %94 : vector<128xf32> to vector<1x1x128xf32>
    %96 = vector.broadcast %95 : vector<1x1x128xf32> to vector<8x16x128xf32>
    %97 = arith.mulf %92, %96 : vector<8x16x128xf32>
    %98 = arith.addf %90, %97 : vector<8x16x128xf32>
    %c2_47 = arith.constant 2 : index
    %c2_48 = arith.constant 2 : index
    %c0_49 = arith.constant 0 : index
    %99 = vector.load %arg10[%c2_47, %c2_48, %c0_49] : memref<10x18x128xbf16, #tpu.memory_space<vmem>>, vector<8x16x128xbf16>
    %100 = arith.extf %99 : vector<8x16x128xbf16> to vector<8x16x128xf32>
    %101 = vector.extract_strided_slice %30 {offsets = [2, 2, 0], sizes = [1, 1, 128], strides = [1, 1, 1]} : vector<3x3x128xf32> to vector<1x1x128xf32>
    %102 = vector.shape_cast %101 : vector<1x1x128xf32> to vector<128xf32>
    %103 = vector.shape_cast %102 : vector<128xf32> to vector<1x1x128xf32>
    %104 = vector.broadcast %103 : vector<1x1x128xf32> to vector<8x16x128xf32>
    %105 = arith.mulf %100, %104 : vector<8x16x128xf32>
    %106 = arith.addf %98, %105 : vector<8x16x128xf32>
    %cst_50 = arith.constant 0.000000e+00 : f32
    %cst_51 = arith.constant 6.000000e+00 : f32
    %107 = vector.broadcast %cst_50 : f32 to vector<8x16x128xf32>
    %108 = arith.maximumf %107, %106 : vector<8x16x128xf32>
    %109 = vector.broadcast %cst_51 : f32 to vector<8x16x128xf32>
    %110 = arith.minimumf %109, %108 : vector<8x16x128xf32>
    %111 = arith.truncf %110 : vector<8x16x128xf32> to vector<8x16x128xbf16>
    %112 = vector.shape_cast %111 : vector<8x16x128xbf16> to vector<128x128xbf16>
    %c0_52 = arith.constant 0 : index
    %c0_53 = arith.constant 0 : index
    %113 = vector.load %arg7[%c0_52, %c0_53] : memref<128x4xbf16, #tpu.memory_space<vmem>>, vector<128x4xbf16>
    %cst_54 = arith.constant dense<0.000000e+00> : vector<128x4xf32>
    %114 = tpu.matmul %112, %113, %cst_54 {dimension_numbers = #tpu.dot_dimension_numbers<[1], [0], [0], [1], [0, 0, 1, 1], [], []>} : vector<128x128xbf16>, vector<128x4xbf16>, vector<128x4xf32> -> vector<128x4xf32>
    %c0_55 = arith.constant 0 : index
    %c0_56 = arith.constant 0 : index
    %115 = vector.load %arg8[%c0_55, %c0_56] : memref<1x4xf32, #tpu.memory_space<vmem>>, vector<1x4xf32>
    %116 = vector.shape_cast %115 : vector<1x4xf32> to vector<4xf32>
    %117 = vector.shape_cast %116 : vector<4xf32> to vector<1x4xf32>
    %118 = vector.broadcast %117 : vector<1x4xf32> to vector<128x4xf32>
    %119 = arith.addf %114, %118 : vector<128x4xf32>
    %120 = vector.shape_cast %119 : vector<128x4xf32> to vector<8x16x4xf32>
    %121 = vector.extract_strided_slice %4 {offsets = [1, 0, 0], sizes = [8, 16, 4], strides = [1, 1, 1]} : vector<10x16x4xbf16> to vector<8x16x4xbf16>
    %122 = arith.extf %121 : vector<8x16x4xbf16> to vector<8x16x4xf32>
    %123 = arith.addf %120, %122 : vector<8x16x4xf32>
    %124 = arith.truncf %123 : vector<8x16x4xf32> to vector<8x16x4xbf16>
    %c0_57 = arith.constant 0 : index
    %c0_58 = arith.constant 0 : index
    %c0_59 = arith.constant 0 : index
    %c0_60 = arith.constant 0 : index
    %125 = vector.load %arg9[%c0_57, %c0_58, %c0_59, %c0_60] : memref<1x8x16x4xbf16, #tpu.memory_space<vmem>>, vector<1x8x16x4xbf16>
    %126 = vector.shape_cast %125 : vector<1x8x16x4xbf16> to vector<8x16x4xbf16>
    %127 = vector.shape_cast %124 : vector<8x16x4xbf16> to vector<1x8x16x4xbf16>
    tpu.vector_store %arg9[%c0_57, %c0_58, %c0_59, %c0_60], %127 {strides = array<i32>} : memref<1x8x16x4xbf16, #tpu.memory_space<vmem>>, vector<1x8x16x4xbf16>,
    return
  }
  func.func @transform_0(%arg0: i32, %arg1: i32) -> (i32, i32, i32, i32) {
    %c0_i32 = arith.constant 0 : i32
    %c0_i32_0 = arith.constant 0 : i32
    %c0_i32_1 = arith.constant 0 : i32
    %c0_i32_2 = arith.constant 0 : i32
    return %arg0, %c0_i32, %c0_i32_0, %c0_i32_1 : i32, i32, i32, i32
  }
  func.func @transform_1(%arg0: i32, %arg1: i32) -> (i32, i32) {
    %c0_i32 = arith.constant 0 : i32
    %c0_i32_0 = arith.constant 0 : i32
    %c0_i32_1 = arith.constant 0 : i32
    return %c0_i32, %c0_i32_0 : i32, i32
  }
  func.func @transform_2(%arg0: i32, %arg1: i32) -> (i32, i32) {
    %c0_i32 = arith.constant 0 : i32
    %c0_i32_0 = arith.constant 0 : i32
    %c0_i32_1 = arith.constant 0 : i32
    return %c0_i32, %c0_i32_0 : i32, i32
  }
  func.func @transform_3(%arg0: i32, %arg1: i32) -> (i32, i32, i32) {
    %c0_i32 = arith.constant 0 : i32
    %c0_i32_0 = arith.constant 0 : i32
    %c0_i32_1 = arith.constant 0 : i32
    %c0_i32_2 = arith.constant 0 : i32
    return %c0_i32, %c0_i32_0, %c0_i32_1 : i32, i32, i32
  }
  func.func @transform_4(%arg0: i32, %arg1: i32) -> (i32, i32) {
    %c0_i32 = arith.constant 0 : i32
    %c0_i32_0 = arith.constant 0 : i32
    %c0_i32_1 = arith.constant 0 : i32
    return %c0_i32, %c0_i32_0 : i32, i32
  }
  func.func @transform_5(%arg0: i32, %arg1: i32) -> (i32, i32) {
    %c0_i32 = arith.constant 0 : i32
    %c0_i32_0 = arith.constant 0 : i32
    %c0_i32_1 = arith.constant 0 : i32
    return %c0_i32, %c0_i32_0 : i32, i32
  }
  func.func @transform_6(%arg0: i32, %arg1: i32) -> (i32, i32) {
    %c0_i32 = arith.constant 0 : i32
    %c0_i32_0 = arith.constant 0 : i32
    %c0_i32_1 = arith.constant 0 : i32
    return %c0_i32, %c0_i32_0 : i32, i32
  }
  func.func @transform_7(%arg0: i32, %arg1: i32) -> (i32, i32, i32, i32) {
    %c0_i32 = arith.constant 0 : i32
    %c0_i32_0 = arith.constant 0 : i32
    %c0_i32_1 = arith.constant 0 : i32
    return %arg0, %arg1, %c0_i32, %c0_i32_0 : i32, i32, i32, i32
  }
}

</mosaic_0001>

<llo_original>
// kernel: tpu_custom_call.1
$region0: #{tpu_custom_call.1}
  #allocation0 [shape = 'u32[]', space=smem, size = 0x4, offset = 0x4, fixed_abs, tag = 'smem constant byte address 0x4 - core index']
  #allocation1 [shape = 'u32[144,128]{1,0:T(1,128)}', space=vmem, size = 0x12000, scoped, tag = 'internal scratch']
  #allocation2 [shape = 'bf16[10,18,128]{2,1,0:T(8,128)(2,1)}', space=vmem, size = 0xf000, scoped, tag = 'scratch operand']
  %s0 = inlined_call_operand.hbm [shape: bf16[2,18,16,4], index: 0, kind: input, shape index: {}]
  %s1 = inlined_call_operand.hbm [shape: bf16[4,128], index: 1, kind: input, shape index: {}]
  %s2 = inlined_call_operand.hbm [shape: f32[1,128], index: 2, kind: input, shape index: {}]
  %s3 = inlined_call_operand.hbm [shape: f32[3,3,128], index: 3, kind: input, shape index: {}]
  %s4 = inlined_call_operand.hbm [shape: f32[1,128], index: 4, kind: input, shape index: {}]
  %s5 = inlined_call_operand.hbm [shape: bf16[128,4], index: 5, kind: input, shape index: {}]
  %s6 = inlined_call_operand.hbm [shape: f32[1,4], index: 6, kind: input, shape index: {}]
  %s7 = inlined_call_operand.hbm [shape: bf16[2,16,16,4], index: 7, kind: output, shape index: {}]
  %s8 = sld [smem:[#allocation0]]
  $region97: #{tpu_custom_call.1} parent=0
    _
  %s10 = ssub.s32 1, %s8
  %s11 = scalar_select 0, %s10, %s8
  $region1: #{tpu_custom_call.1} parent=0
    #allocation3 [shape = 'u8[147456]{0}', space=vmem, size = 0x24000, scoped, tag = 'input window, operand 0']
    #allocation4 [shape = 's32[2]{0}', space=sflag, size = 0x8, scoped, tag = 'scoped memory for tpu_custom_call.1']
    #allocation5 [shape = 's32[2]{0}', space=sflag, size = 0x8, scoped, tag = 'scoped memory for tpu_custom_call.1']
    #allocation6 [shape = 'u8[1024]{0}', space=vmem, size = 0x400, scoped, tag = 'input window, operand 1, single buffered']
    #allocation7 [shape = 's32[1]{0}', space=sflag, size = 0x4, scoped, tag = 'scoped memory for tpu_custom_call.1']
    #allocation8 [shape = 'u8[512]{0}', space=vmem, size = 0x400, scoped, tag = 'input window, operand 2, single buffered']
    #allocation9 [shape = 'u8[6144]{0}', space=vmem, size = 0x1800, scoped, tag = 'input window, operand 3, single buffered']
    #allocation10 [shape = 's32[1]{0}', space=sflag, size = 0x4, scoped, tag = 'scoped memory for tpu_custom_call.1']
    #allocation11 [shape = 'u8[512]{0}', space=vmem, size = 0x400, scoped, tag = 'input window, operand 4, single buffered']
    #allocation12 [shape = 'u8[32768]{0}', space=vmem, size = 0x8000, scoped, tag = 'input window, operand 5, single buffered']
    #allocation13 [shape = 's32[1]{0}', space=sflag, size = 0x4, scoped, tag = 'scoped memory for tpu_custom_call.1']
    #allocation14 [shape = 'u8[512]{0}', space=vmem, size = 0x400, scoped, tag = 'input window, operand 6, single buffered']
    #allocation15 [shape = 'u8[65536]{0}', space=vmem, size = 0x10000, scoped, tag = 'output window, operand 0']
    %12 = vsyncpa [#allocation4], 0
    %s13 = scalar_lea.sflag [#allocation4], 1
    %14 = vsyncpa %s13, 0
    %15 = vsyncpa [#allocation7], 0
    %16 = vsyncpa [#allocation10], 0
    %17 = vsyncpa [#allocation13], 0
    %18 = vsyncpa [#allocation5], 0
    %s19 = scalar_lea.sflag [#allocation5], 1
    %20 = vsyncpa %s19, 0
    loop: start=0, step=1, limit=6
    $region2: #{tpu_custom_call.1} parent=1 // loop_pre_header
      _
    $region3: #{tpu_custom_call.1} parent=1 // loop_header
      %s22 = sphi 0, %s26
      %p23 = scmp.ge.s32.totalorder %s22, 6
      %s29 = sphi 0, %s41
      %s30 = sphi 0, %s37
      %s31 = sphi 0, %s29
      %s32 = sphi 0, %s30
      %s33 = sphi 0, %s31
      %s34 = sphi 0, %s32
      %s44 = sphi 0, %s46
      %s47 = sphi 0, %s44
      %s48 = sphi 0, %s47
      %s64 = sphi 0, %s48
      %s68 = sphi 0, %s68
      %s70 = sphi 0, %s68
      %s71 = sphi 0, %s70
      %s85 = sphi 0, %s71
      %s89 = sphi 0, %s89
      %s91 = sphi 0, %s89
      %s92 = sphi 0, %s91
      %s106 = sphi 0, %s92
      %s110 = sphi 0, %s110
      %s112 = sphi 0, %s110
      %s113 = sphi 0, %s112
      %s127 = sphi 0, %s113
      %s131 = sphi 0, %s131
      %s133 = sphi 0, %s131
      %s134 = sphi 0, %s133
      %s148 = sphi 0, %s134
      %s152 = sphi 0, %s152
      %s154 = sphi 0, %s152
      %s155 = sphi 0, %s154
      %s169 = sphi 0, %s155
      %s173 = sphi 0, %s173
      %s175 = sphi 0, %s173
      %s176 = sphi 0, %s175
      %s190 = sphi 0, %s176
      %s198 = sphi 0, %s200
      %s201 = sphi 0, %s198
      %s202 = sphi 0, %s201
      %s218 = sphi 0, %s202
    $region4: #{tpu_custom_call.1} parent=1 // loop_header_branch
      %25 = sbr.rel (%p23) target = $region8
    $region5: #{tpu_custom_call.1} parent=1 // loop_body
      %s27 = ssub.s32 %s22, 1
      %s28 = ssub.s32 %s22, 2
      %s35 = sadd.s32 1, %s30
      %p36 = scmp.ge.s32.totalorder %s35, 2
      %s37 = scalar_select %p36, 0, %s35
      %s38 = sadd.s32 1, %s29
      %s39 = scalar_select %p36, %s38, %s29
      %p40 = scmp.ge.s32.totalorder %s39, 2
      %s41 = scalar_select %p40, 0, %s39
      %s42 = ssub.s32 %s29, %s41
      %p43 = scmp.eq.s32.totalorder %s42, 0
      %s45 = sadd.s32 %s44, 1
      %s46 = scalar_select %p43, %s44, %s45
      %p49 = pneg %p43
      %p50 = scmp.eq.s32.totalorder %s22, 3
      %p51 = por %p49, %p50
      %p52 = scmp.ne.s32.totalorder %s44, %s47
      %p53 = scmp.eq.s32.totalorder %s22, 0
      %p54 = por %p52, %p53
      %p55 = scmp.ne.s32.totalorder %s44, %s47
      %p56 = scmp.eq.s32.totalorder %s27, 3
      %p57 = por %p55, %p56
      %p58 = scmp.ne.s32.totalorder %s47, %s48
      %p59 = scmp.eq.s32.totalorder %s27, 0
      %p60 = por %p58, %p59
      %p61 = scmp.ne.s32.totalorder %s47, %s48
      %p62 = scmp.eq.s32.totalorder %s28, 3
      %p63 = por %p61, %p62
      %p65 = scmp.ne.s32.totalorder %s48, %s64
      %p66 = scmp.eq.s32.totalorder %s28, 0
      %p67 = por %p65, %p66
      %s69 = sadd.s32 %s68, 1
      %p72 = scmp.eq.s32.totalorder %s22, 3
      %p73 = scmp.ne.s32.totalorder %s68, %s70
      %p74 = scmp.eq.s32.totalorder %s22, 0
      %p75 = por %p73, %p74
      %p76 = scmp.ne.s32.totalorder %s68, %s70
      %p77 = scmp.eq.s32.totalorder %s27, 3
      %p78 = por %p76, %p77
      %p79 = scmp.ne.s32.totalorder %s70, %s71
      %p80 = scmp.eq.s32.totalorder %s27, 0
      %p81 = por %p79, %p80
      %p82 = scmp.ne.s32.totalorder %s70, %s71
      %p83 = scmp.eq.s32.totalorder %s28, 3
      %p84 = por %p82, %p83
      %p86 = scmp.ne.s32.totalorder %s71, %s85
      %p87 = scmp.eq.s32.totalorder %s28, 0
      %p88 = por %p86, %p87
      %s90 = sadd.s32 %s89, 1
      %p93 = scmp.eq.s32.totalorder %s22, 3
      %p94 = scmp.ne.s32.totalorder %s89, %s91
      %p95 = scmp.eq.s32.totalorder %s22, 0
      %p96 = por %p94, %p95
      %p97 = scmp.ne.s32.totalorder %s89, %s91
      %p98 = scmp.eq.s32.totalorder %s27, 3
      %p99 = por %p97, %p98
      %p100 = scmp.ne.s32.totalorder %s91, %s92
      %p101 = scmp.eq.s32.totalorder %s27, 0
      %p102 = por %p100, %p101
      %p103 = scmp.ne.s32.totalorder %s91, %s92
      %p104 = scmp.eq.s32.totalorder %s28, 3
      %p105 = por %p103, %p104
      %p107 = scmp.ne.s32.totalorder %s92, %s106
      %p108 = scmp.eq.s32.totalorder %s28, 0
      %p109 = por %p107, %p108
      %s111 = sadd.s32 %s110, 1
      %p114 = scmp.eq.s32.totalorder %s22, 3
      %p115 = scmp.ne.s32.totalorder %s110, %s112
      %p116 = scmp.eq.s32.totalorder %s22, 0
      %p117 = por %p115, %p116
      %p118 = scmp.ne.s32.totalorder %s110, %s112
      %p119 = scmp.eq.s32.totalorder %s27, 3
      %p120 = por %p118, %p119
      %p121 = scmp.ne.s32.totalorder %s112, %s113
      %p122 = scmp.eq.s32.totalorder %s27, 0
      %p123 = por %p121, %p122
      %p124 = scmp.ne.s32.totalorder %s112, %s113
      %p125 = scmp.eq.s32.totalorder %s28, 3
      %p126 = por %p124, %p125
      %p128 = scmp.ne.s32.totalorder %s113, %s127
      %p129 = scmp.eq.s32.totalorder %s28, 0
      %p130 = por %p128, %p129
      %s132 = sadd.s32 %s131, 1
      %p135 = scmp.eq.s32.totalorder %s22, 3
      %p136 = scmp.ne.s32.totalorder %s131, %s133
      %p137 = scmp.eq.s32.totalorder %s22, 0
      %p138 = por %p136, %p137
      %p139 = scmp.ne.s32.totalorder %s131, %s133
      %p140 = scmp.eq.s32.totalorder %s27, 3
      %p141 = por %p139, %p140
      %p142 = scmp.ne.s32.totalorder %s133, %s134
      %p143 = scmp.eq.s32.totalorder %s27, 0
      %p144 = por %p142, %p143
      %p145 = scmp.ne.s32.totalorder %s133, %s134
      %p146 = scmp.eq.s32.totalorder %s28, 3
      %p147 = por %p145, %p146
      %p149 = scmp.ne.s32.totalorder %s134, %s148
      %p150 = scmp.eq.s32.totalorder %s28, 0
      %p151 = por %p149, %p150
      %s153 = sadd.s32 %s152, 1
      %p156 = scmp.eq.s32.totalorder %s22, 3
      %p157 = scmp.ne.s32.totalorder %s152, %s154
      %p158 = scmp.eq.s32.totalorder %s22, 0
      %p159 = por %p157, %p158
      %p160 = scmp.ne.s32.totalorder %s152, %s154
      %p161 = scmp.eq.s32.totalorder %s27, 3
      %p162 = por %p160, %p161
      %p163 = scmp.ne.s32.totalorder %s154, %s155
      %p164 = scmp.eq.s32.totalorder %s27, 0
      %p165 = por %p163, %p164
      %p166 = scmp.ne.s32.totalorder %s154, %s155
      %p167 = scmp.eq.s32.totalorder %s28, 3
      %p168 = por %p166, %p167
      %p170 = scmp.ne.s32.totalorder %s155, %s169
      %p171 = scmp.eq.s32.totalorder %s28, 0
      %p172 = por %p170, %p171
      %s174 = sadd.s32 %s173, 1
      %p177 = scmp.eq.s32.totalorder %s22, 3
      %p178 = scmp.ne.s32.totalorder %s173, %s175
      %p179 = scmp.eq.s32.totalorder %s22, 0
      %p180 = por %p178, %p179
      %p181 = scmp.ne.s32.totalorder %s173, %s175
      %p182 = scmp.eq.s32.totalorder %s27, 3
      %p183 = por %p181, %p182
      %p184 = scmp.ne.s32.totalorder %s175, %s176
      %p185 = scmp.eq.s32.totalorder %s27, 0
      %p186 = por %p184, %p185
      %p187 = scmp.ne.s32.totalorder %s175, %s176
      %p188 = scmp.eq.s32.totalorder %s28, 3
      %p189 = por %p187, %p188
      %p191 = scmp.ne.s32.totalorder %s176, %s190
      %p192 = scmp.eq.s32.totalorder %s28, 0
      %p193 = por %p191, %p192
      %s194 = ssub.s32 %s29, %s41
      %s195 = ssub.s32 %s30, %s37
      %s196 = sor.u32 %s194, %s195
      %p197 = scmp.eq.s32.totalorder %s196, 0
      %s199 = sadd.s32 %s198, 1
      %s200 = scalar_select %p197, %s198, %s199
      %p203 = pneg %p197
      %p204 = scmp.eq.s32.totalorder %s22, 3
      %p205 = por %p203, %p204
      %p206 = scmp.ne.s32.totalorder %s198, %s201
      %p207 = scmp.eq.s32.totalorder %s22, 0
      %p208 = por %p206, %p207
      %p209 = scmp.ne.s32.totalorder %s198, %s201
      %p210 = scmp.eq.s32.totalorder %s27, 3
      %p211 = por %p209, %p210
      %p212 = scmp.ne.s32.totalorder %s201, %s202
      %p213 = scmp.eq.s32.totalorder %s27, 0
      %p214 = por %p212, %p213
      %p215 = scmp.ne.s32.totalorder %s201, %s202
      %p216 = scmp.eq.s32.totalorder %s28, 3
      %p217 = por %p215, %p216
      %p219 = scmp.ne.s32.totalorder %s202, %s218
      %p220 = scmp.eq.s32.totalorder %s28, 0
      %p221 = por %p219, %p220
      %p222 = scmp.le.s32.totalorder 1, %s22
      %p223 = scmp.lt.s32.totalorder %s22, 5
      %p224 = pnand %p222, %p223
      %p225 = pneg %p224
      // Predicated region
      $region9: #{tpu_custom_call.1} parent=5 // pred_check
        _
      $region10: #{tpu_custom_call.1} parent=5 // pred_check_branch
        %227 = sbr.rel (%p224) target = $region12
      $region11: #{tpu_custom_call.1} parent=5 // pred_region
        %s228 = ssub.s32 %s22, 1
        // Predicated region
        $region13: #{tpu_custom_call.1} parent=11 // pred_check
          %p229 = pneg %p81
        $region14: #{tpu_custom_call.1} parent=11 // pred_check_branch
          %231 = sbr.rel (%p229) target = $region16
        $region15: #{tpu_custom_call.1} parent=11 // pred_region
          %s233 = ssub.s32 32, 32
          %234 = vsyncadd [#allocation7], %s233
          %s236 = sshll.u32 [#allocation6], 4
          %s237 = int_to_ptr.vmem [resolvable:$true] %s236
          %239 = dma.hbm_to_vmem [thread:$0]  %s1, 32, %s237, [#allocation7]
        $region16: #{tpu_custom_call.1} parent=11 // pred_fallthru
          _
        // Predicated region
        $region17: #{tpu_custom_call.1} parent=11 // pred_check
          %p240 = pneg %p102
        $region18: #{tpu_custom_call.1} parent=11 // pred_check_branch
          %242 = sbr.rel (%p240) target = $region20
        $region19: #{tpu_custom_call.1} parent=11 // pred_region
          %s244 = ssub.s32 16, 16
          %245 = vsyncadd [#allocation7], %s244
          %s247 = sshll.u32 [#allocation8], 4
          %s248 = int_to_ptr.vmem [resolvable:$true] %s247
          %250 = dma.hbm_to_vmem [thread:$0]  %s2, 16, %s248, [#allocation7]
        $region20: #{tpu_custom_call.1} parent=11 // pred_fallthru
          _
        // Predicated region
        $region21: #{tpu_custom_call.1} parent=11 // pred_check
          %p251 = pneg %p123
        $region22: #{tpu_custom_call.1} parent=11 // pred_check_branch
          %253 = sbr.rel (%p251) target = $region24
        $region23: #{tpu_custom_call.1} parent=11 // pred_region
          %s255 = ssub.s32 192, 192
          %256 = vsyncadd [#allocation10], %s255
          %s257 = sshll.u32 [#allocation9], 4
          %s258 = int_to_ptr.vmem [resolvable:$true] %s257
          %263 = dma.hbm_to_vmem [thread:$0]  %s3, 192, %s258, [#allocation10], 64, 64, 4
        $region24: #{tpu_custom_call.1} parent=11 // pred_fallthru
          _
        // Predicated region
        $region25: #{tpu_custom_call.1} parent=11 // pred_check
          %p264 = pneg %p144
        $region26: #{tpu_custom_call.1} parent=11 // pred_check_branch
          %266 = sbr.rel (%p264) target = $region28
        $region27: #{tpu_custom_call.1} parent=11 // pred_region
          %s268 = ssub.s32 16, 16
          %269 = vsyncadd [#allocation10], %s268
          %s271 = sshll.u32 [#allocation11], 4
          %s272 = int_to_ptr.vmem [resolvable:$true] %s271
          %274 = dma.hbm_to_vmem [thread:$0]  %s4, 16, %s272, [#allocation10]
        $region28: #{tpu_custom_call.1} parent=11 // pred_fallthru
          _
        // Predicated region
        $region29: #{tpu_custom_call.1} parent=11 // pred_check
          %p275 = pneg %p165
        $region30: #{tpu_custom_call.1} parent=11 // pred_check_branch
          %277 = sbr.rel (%p275) target = $region32
        $region31: #{tpu_custom_call.1} parent=11 // pred_region
          %s279 = ssub.s32 1024, 1024
          %280 = vsyncadd [#allocation13], %s279
          %s281 = sshll.u32 [#allocation12], 4
          %s282 = int_to_ptr.vmem [resolvable:$true] %s281
          %287 = dma.hbm_to_vmem [thread:$0]  %s5, 1024, %s282, [#allocation13], 64, 64, 4
        $region32: #{tpu_custom_call.1} parent=11 // pred_fallthru
          _
        // Predicated region
        $region33: #{tpu_custom_call.1} parent=11 // pred_check
          %p288 = pneg %p186
        $region34: #{tpu_custom_call.1} parent=11 // pred_check_branch
          %290 = sbr.rel (%p288) target = $region36
        $region35: #{tpu_custom_call.1} parent=11 // pred_region
          %s292 = ssub.s32 16, 16
          %293 = vsyncadd [#allocation13], %s292
          %s295 = sshll.u32 [#allocation14], 4
          %s296 = int_to_ptr.vmem [resolvable:$true] %s295
          %298 = dma.hbm_to_vmem [thread:$0]  %s6, 16, %s296, [#allocation13]
        $region36: #{tpu_custom_call.1} parent=11 // pred_fallthru
          _
      $region12: #{tpu_custom_call.1} parent=5 // pred_fallthru
        _
      %p299 = scmp.lt.s32.totalorder %s22, 4
      // Predicated region
      $region37: #{tpu_custom_call.1} parent=5 // pred_check
        %p300 = pneg %p299
      $region38: #{tpu_custom_call.1} parent=5 // pred_check_branch
        %302 = sbr.rel (%p300) target = $region40
      $region39: #{tpu_custom_call.1} parent=5 // pred_region
        // Predicated region
        $region41: #{tpu_custom_call.1} parent=39 // pred_check
          %p303 = pneg %p54
        $region42: #{tpu_custom_call.1} parent=39 // pred_check_branch
          %305 = sbr.rel (%p303) target = $region44
        $region43: #{tpu_custom_call.1} parent=39 // pred_region
          %s306 = sand.u32 %s44, 1
          %s307 = scalar_lea.sflag [#allocation4], %s306
          %s308 = sand.u32 %s44, 1
          %s309 = smul.addr %s308, 144
          %s310 = scalar_lea.vmem [#allocation3], %s309
          %s312 = ssub.s32 2304, 2304
          %313 = vsyncadd %s307, %s312
          %s314 = smul.addr %s29, 36
          %s315 = smul.addr %s314, 64
          %s316 = scalar_lea.hbm %s0, %s315
          %s317 = sshll.u32 %s310, 4
          %s318 = int_to_ptr.vmem [resolvable:$true] %s317
          %323 = dma.hbm_to_vmem [thread:$0]  %s316, 2304, %s318, %s307, 64, 64, 4
        $region44: #{tpu_custom_call.1} parent=39 // pred_fallthru
          _
      $region40: #{tpu_custom_call.1} parent=5 // pred_fallthru
        _
      %p324 = scmp.le.s32.totalorder 1, %s22
      %p325 = scmp.lt.s32.totalorder %s22, 5
      %p326 = pnand %p324, %p325
      %p327 = pneg %p326
      // Predicated region
      $region45: #{tpu_custom_call.1} parent=5 // pred_check
        _
      $region46: #{tpu_custom_call.1} parent=5 // pred_check_branch
        %329 = sbr.rel (%p326) target = $region48
      $region47: #{tpu_custom_call.1} parent=5 // pred_region
        %s330 = ssub.s32 %s22, 1
        %s331 = sand.u32 %s47, 1
        %s332 = scalar_lea.sflag [#allocation4], %s331
        %s333 = sand.u32 %s47, 1
        %s334 = smul.addr %s333, 144
        %s335 = scalar_lea.vmem [#allocation3], %s334
        // Predicated region
        $region49: #{tpu_custom_call.1} parent=47 // pred_check
          %p336 = pneg %p60
        $region50: #{tpu_custom_call.1} parent=47 // pred_check_branch
          %338 = sbr.rel (%p336) target = $region52
        $region51: #{tpu_custom_call.1} parent=47 // pred_region
          %339 = dma.done %s332, 2304
        $region52: #{tpu_custom_call.1} parent=47 // pred_fallthru
          _
        // Predicated region
        $region53: #{tpu_custom_call.1} parent=47 // pred_check
          %p340 = pneg %p81
        $region54: #{tpu_custom_call.1} parent=47 // pred_check_branch
          %342 = sbr.rel (%p340) target = $region56
        $region55: #{tpu_custom_call.1} parent=47 // pred_region
          %343 = dma.done [#allocation7], 32
        $region56: #{tpu_custom_call.1} parent=47 // pred_fallthru
          _
        // Predicated region
        $region57: #{tpu_custom_call.1} parent=47 // pred_check
          %p344 = pneg %p102
        $region58: #{tpu_custom_call.1} parent=47 // pred_check_branch
          %346 = sbr.rel (%p344) target = $region60
        $region59: #{tpu_custom_call.1} parent=47 // pred_region
          %347 = dma.done [#allocation7], 16
        $region60: #{tpu_custom_call.1} parent=47 // pred_fallthru
          _
        // Predicated region
        $region61: #{tpu_custom_call.1} parent=47 // pred_check
          %p348 = pneg %p123
        $region62: #{tpu_custom_call.1} parent=47 // pred_check_branch
          %350 = sbr.rel (%p348) target = $region64
        $region63: #{tpu_custom_call.1} parent=47 // pred_region
          %351 = dma.done [#allocation10], 192
        $region64: #{tpu_custom_call.1} parent=47 // pred_fallthru
          _
        // Predicated region
        $region65: #{tpu_custom_call.1} parent=47 // pred_check
          %p352 = pneg %p144
        $region66: #{tpu_custom_call.1} parent=47 // pred_check_branch
          %354 = sbr.rel (%p352) target = $region68
        $region67: #{tpu_custom_call.1} parent=47 // pred_region
          %355 = dma.done [#allocation10], 16
        $region68: #{tpu_custom_call.1} parent=47 // pred_fallthru
          _
        // Predicated region
        $region69: #{tpu_custom_call.1} parent=47 // pred_check
          %p356 = pneg %p165
        $region70: #{tpu_custom_call.1} parent=47 // pred_check_branch
          %358 = sbr.rel (%p356) target = $region72
        $region71: #{tpu_custom_call.1} parent=47 // pred_region
          %359 = dma.done [#allocation13], 1024
        $region72: #{tpu_custom_call.1} parent=47 // pred_fallthru
          _
        // Predicated region
        $region73: #{tpu_custom_call.1} parent=47 // pred_check
          %p360 = pneg %p186
        $region74: #{tpu_custom_call.1} parent=47 // pred_check_branch
          %362 = sbr.rel (%p360) target = $region76
        $region75: #{tpu_custom_call.1} parent=47 // pred_region
          %363 = dma.done [#allocation13], 16
        $region76: #{tpu_custom_call.1} parent=47 // pred_fallthru
          _
        %s364 = sand.u32 %s47, 1
        %s365 = scalar_lea.sflag [#allocation4], %s364
        %s366 = sand.u32 %s47, 1
        %s367 = smul.addr %s366, 144
        %s368 = scalar_lea.vmem [#allocation3], %s367
        %p369 = pneg %p60
        %p370 = pneg %p57
        %p371 = pneg %p81
        %p372 = pneg %p78
        %p373 = pneg %p102
        %p374 = pneg %p99
        %p375 = pneg %p123
        %p376 = pneg %p120
        %p377 = pneg %p144
        %p378 = pneg %p141
        %p379 = pneg %p165
        %p380 = pneg %p162
        %p381 = pneg %p186
        %p382 = pneg %p183
        %p383 = pneg %p214
        %p384 = pneg %p211
        %s385 = sand.u32 %s201, 1
        %s386 = scalar_lea.sflag [#allocation5], %s385
        %s387 = sand.u32 %s201, 1
        %s388 = smul.addr %s387, 64
        %s389 = scalar_lea.vmem [#allocation15], %s388
        %s390 = smul.u32 8, %s32
        %s392 = smul.u32 %s32, 8
        %s393 = smul.u32 %s392, 2
        %s394 = smul.addr %s393, 4
        %s395 = scalar_lea.vmem %s335, %s394 [#allocation3]
        %v396 = vld [vmem:[%s395] sm:$0xf]
        %v397 = vld [vmem:[%s395 + $0x4] sm:$0xf]
        %v398 = vld [vmem:[%s395 + $0x8] sm:$0xf]
        %v399 = vld [vmem:[%s395 + $0xc] sm:$0xf]
        %v400 = vld [vmem:[%s395 + $0x10] sm:$0xf]
        %v401 = vld [vmem:[%s395 + $0x14] sm:$0xf]
        %v402 = vld [vmem:[%s395 + $0x18] sm:$0xf]
        %v403 = vld [vmem:[%s395 + $0x1c] sm:$0xf]
        %v404 = vld [vmem:[%s395 + $0x20] sm:$0xf]
        %v405 = vld [vmem:[%s395 + $0x24] sm:$0xf]
        %v406 = vld [vmem:[%s395 + $0x28] sm:$0xf]
        %v407 = vld [vmem:[%s395 + $0x2c] sm:$0xf]
        %v408 = vld [vmem:[%s395 + $0x30] sm:$0xf]
        %v409 = vld [vmem:[%s395 + $0x34] sm:$0xf]
        %v410 = vld [vmem:[%s395 + $0x38] sm:$0xf]
        %v411 = vld [vmem:[%s395 + $0x3c] sm:$0xf]
        %v412 = vld [vmem:[%s395 + $0x40] sm:$0xf]
        %v413 = vld [vmem:[%s395 + $0x44] sm:$0xf]
        %v414 = vld [vmem:[%s395 + $0x48] sm:$0xf]
        %v415 = vld [vmem:[%s395 + $0x4c] sm:$0xf]
        %v416 = vld [vmem:[#allocation6] sm:$0x3]
        %v417 = vld [vmem:[#allocation8] sm:$0x1]
        %v419 = vlaneseq
        %v420 = vshrl.u32 %v419, 7
        %v421 = vsub.s32 0, %v420
        %v422 = vrot.slane %v417, %v421
        %v444 = vunpack.c.l.b16 %v396
        %v445 = vunpack.c.l.b16 %v397
        %v446 = vunpack.c.l.b16 %v398
        %v447 = vunpack.c.l.b16 %v399
        %v448 = vunpack.c.l.b16 %v400
        %v449 = vunpack.c.l.b16 %v401
        %v450 = vunpack.c.l.b16 %v402
        %v451 = vunpack.c.l.b16 %v403
        %v452 = vunpack.c.l.b16 %v404
        %v453 = vunpack.c.l.b16 %v405
        %v454 = vunpack.c.l.b16 %v406
        %v455 = vunpack.c.l.b16 %v407
        %v456 = vunpack.c.l.b16 %v408
        %v457 = vunpack.c.l.b16 %v409
        %v458 = vunpack.c.l.b16 %v410
        %v459 = vunpack.c.l.b16 %v411
        %v460 = vunpack.c.l.b16 %v412
        %v461 = vunpack.c.l.b16 %v413
        %v462 = vunpack.c.l.b16 %v414
        %v463 = vunpack.c.l.b16 %v415
        %v464 = vpack.c.b16 %v445, %v444
        %v465 = vpack.c.b16 %v447, %v446
        %v466 = vpack.c.b16 %v449, %v448
        %v467 = vpack.c.b16 %v451, %v450
        %v468 = vpack.c.b16 %v453, %v452
        %v469 = vpack.c.b16 %v455, %v454
        %v470 = vpack.c.b16 %v457, %v456
        %v471 = vpack.c.b16 %v459, %v458
        %v472 = vpack.c.b16 %v461, %v460
        %v473 = vpack.c.b16 %v463, %v462
        %vm474 = vcmask 31744
        %v476 = vsel %vm474, %v464, 0
        %v479 = vsel %vm474, %v465, 0
        %v482 = vsel %vm474, %v466, 0
        %v485 = vsel %vm474, %v467, 0
        %v488 = vsel %vm474, %v468, 0
        %v491 = vsel %vm474, %v469, 0
        %v494 = vsel %vm474, %v470, 0
        %v497 = vsel %vm474, %v471, 0
        %v500 = vsel %vm474, %v472, 0
        %v503 = vsel %vm474, %v473, 0
        %vm505 = vcmask 1041408
        %v507 = vsel %vm505, %v416, 0
        %509 = vmatprep.subr.bf16.mxu0 0
        %510 = vmatpush1.bf16.msra.mxu0 %v507
        %511 = vmatprep.subr.bf16.mxu0 0
        %512 = vmatpush1.bf16.msra.mxu0 0
        %513 = vmatprep.subr.bf16.mxu0 0
        %514 = vmatpush1.bf16.msra.mxu0 0
        %515 = vmatprep.subr.bf16.mxu0 0
        %516 = vmatpush1.bf16.msra.mxu0 0
        %517 = vmatprep.subr.bf16.mxu0 0
        %518 = vmatpush1.bf16.msra.mxu0 0
        %519 = vmatprep.subr.bf16.mxu0 0
        %520 = vmatpush1.bf16.msra.mxu0 0
        %521 = vmatprep.subr.bf16.mxu0 0
        %522 = vmatpush1.bf16.msra.mxu0 0
        %523 = vmatprep.subr.bf16.mxu0 0
        %524 = vmatpush1.bf16.msra.mxu0 0
        %525 = vmatprep.subr.bf16.mxu0 0
        %526 = vmatpush1.bf16.msra.mxu0 0
        %527 = vmatprep.subr.bf16.mxu0 0
        %528 = vmatpush1.bf16.msra.mxu0 0
        %529 = vmatprep.subr.bf16.mxu0 0
        %530 = vmatpush1.bf16.msra.mxu0 0
        %531 = vmatprep.subr.bf16.mxu0 0
        %532 = vmatpush1.bf16.msra.mxu0 0
        %533 = vmatprep.subr.bf16.mxu0 0
        %534 = vmatpush1.bf16.msra.mxu0 0
        %535 = vmatprep.subr.bf16.mxu0 0
        %536 = vmatpush1.bf16.msra.mxu0 0
        %537 = vmatprep.subr.bf16.mxu0 0
        %538 = vmatpush1.bf16.msra.mxu0 0
        %539 = vmatprep.subr.bf16.mxu0 0
        %540 = vmatpush1.bf16.msra.mxu0 0
        %541 = vmatprep.mubr.bf16.mxu0 0
        %542 = vmatmul.mubr.bf16.gmra.mrb[0].mxu0 %v476
        %v543 = vpop.f32.mrb[0].mxu0
        %v544 = vadd.f32 %v422, %v543
        %v545 = vpop.f32.mrb[0].mxu0
        %v546 = vpop.f32.mrb[0].mxu0
        %v547 = vadd.f32 %v422, %v546
        %v548 = vpop.f32.mrb[0].mxu0
        %549 = vmatprep.mubr.bf16.mxu0 0
        %550 = vmatmul.mubr.bf16.gmra.mrb[0].mxu0 %v479
        %v551 = vpop.f32.mrb[0].mxu0
        %v552 = vadd.f32 %v422, %v551
        %v553 = vpop.f32.mrb[0].mxu0
        %v554 = vpop.f32.mrb[0].mxu0
        %v555 = vadd.f32 %v422, %v554
        %v556 = vpop.f32.mrb[0].mxu0
        %557 = vmatprep.mubr.bf16.mxu0 0
        %558 = vmatmul.mubr.bf16.gmra.mrb[0].mxu0 %v482
        %v559 = vpop.f32.mrb[0].mxu0
        %v560 = vadd.f32 %v422, %v559
        %v561 = vpop.f32.mrb[0].mxu0
        %v562 = vpop.f32.mrb[0].mxu0
        %v563 = vadd.f32 %v422, %v562
        %v564 = vpop.f32.mrb[0].mxu0
        %565 = vmatprep.mubr.bf16.mxu0 0
        %566 = vmatmul.mubr.bf16.gmra.mrb[0].mxu0 %v485
        %v567 = vpop.f32.mrb[0].mxu0
        %v568 = vadd.f32 %v422, %v567
        %v569 = vpop.f32.mrb[0].mxu0
        %v570 = vpop.f32.mrb[0].mxu0
        %v571 = vadd.f32 %v422, %v570
        %v572 = vpop.f32.mrb[0].mxu0
        %573 = vmatprep.mubr.bf16.mxu0 0
        %574 = vmatmul.mubr.bf16.gmra.mrb[0].mxu0 %v488
        %v575 = vpop.f32.mrb[0].mxu0
        %v576 = vadd.f32 %v422, %v575
        %v577 = vpop.f32.mrb[0].mxu0
        %v578 = vpop.f32.mrb[0].mxu0
        %v579 = vadd.f32 %v422, %v578
        %v580 = vpop.f32.mrb[0].mxu0
        %581 = vmatprep.mubr.bf16.mxu0 0
        %582 = vmatmul.mubr.bf16.gmra.mrb[0].mxu0 %v491
        %v583 = vpop.f32.mrb[0].mxu0
        %v584 = vadd.f32 %v422, %v583
        %v585 = vpop.f32.mrb[0].mxu0
        %v586 = vpop.f32.mrb[0].mxu0
        %v587 = vadd.f32 %v422, %v586
        %v588 = vpop.f32.mrb[0].mxu0
        %589 = vmatprep.mubr.bf16.mxu0 0
        %590 = vmatmul.mubr.bf16.gmra.mrb[0].mxu0 %v494
        %v591 = vpop.f32.mrb[0].mxu0
        %v592 = vadd.f32 %v422, %v591
        %v593 = vpop.f32.mrb[0].mxu0
        %v594 = vpop.f32.mrb[0].mxu0
        %v595 = vadd.f32 %v422, %v594
        %v596 = vpop.f32.mrb[0].mxu0
        %597 = vmatprep.mubr.bf16.mxu0 0
        %598 = vmatmul.mubr.bf16.gmra.mrb[0].mxu0 %v497
        %v599 = vpop.f32.mrb[0].mxu0
        %v600 = vadd.f32 %v422, %v599
        %v601 = vpop.f32.mrb[0].mxu0
        %v602 = vpop.f32.mrb[0].mxu0
        %v603 = vadd.f32 %v422, %v602
        %v604 = vpop.f32.mrb[0].mxu0
        %605 = vmatprep.mubr.bf16.mxu0 0
        %606 = vmatmul.mubr.bf16.gmra.mrb[0].mxu0 %v500
        %v607 = vpop.f32.mrb[0].mxu0
        %v608 = vadd.f32 %v422, %v607
        %v609 = vpop.f32.mrb[0].mxu0
        %v610 = vpop.f32.mrb[0].mxu0
        %v611 = vadd.f32 %v422, %v610
        %v612 = vpop.f32.mrb[0].mxu0
        %613 = vmatprep.mubr.bf16.mxu0 0
        %614 = vmatmul.mubr.bf16.gmra.mrb[0].mxu0 %v503
        %v615 = vpop.f32.mrb[0].mxu0
        %v616 = vadd.f32 %v422, %v615
        %v617 = vpop.f32.mrb[0].mxu0
        %v618 = vpop.f32.mrb[0].mxu0
        %v619 = vadd.f32 %v422, %v618
        %v620 = vpop.f32.mrb[0].mxu0
        %621 = vdwg.mxu0
        %v622 = vmax.f32 %v544, 0.0
        %v623 = vmax.f32 %v547, 0.0
        %v624 = vmax.f32 %v552, 0.0
        %v625 = vmax.f32 %v555, 0.0
        %v626 = vmax.f32 %v560, 0.0
        %v627 = vmax.f32 %v563, 0.0
        %v628 = vmax.f32 %v568, 0.0
        %v629 = vmax.f32 %v571, 0.0
        %v630 = vmax.f32 %v576, 0.0
        %v631 = vmax.f32 %v579, 0.0
        %v632 = vmax.f32 %v584, 0.0
        %v633 = vmax.f32 %v587, 0.0
        %v634 = vmax.f32 %v592, 0.0
        %v635 = vmax.f32 %v595, 0.0
        %v636 = vmax.f32 %v600, 0.0
        %v637 = vmax.f32 %v603, 0.0
        %v638 = vmax.f32 %v608, 0.0
        %v639 = vmax.f32 %v611, 0.0
        %v640 = vmax.f32 %v616, 0.0
        %v641 = vmax.f32 %v619, 0.0
        %v642 = vmin.f32 %v622, 6.0
        %v643 = vmin.f32 %v623, 6.0
        %v644 = vmin.f32 %v624, 6.0
        %v645 = vmin.f32 %v625, 6.0
        %v646 = vmin.f32 %v626, 6.0
        %v647 = vmin.f32 %v627, 6.0
        %v648 = vmin.f32 %v628, 6.0
        %v649 = vmin.f32 %v629, 6.0
        %v650 = vmin.f32 %v630, 6.0
        %v651 = vmin.f32 %v631, 6.0
        %v652 = vmin.f32 %v632, 6.0
        %v653 = vmin.f32 %v633, 6.0
        %v654 = vmin.f32 %v634, 6.0
        %v655 = vmin.f32 %v635, 6.0
        %v656 = vmin.f32 %v636, 6.0
        %v657 = vmin.f32 %v637, 6.0
        %v658 = vmin.f32 %v638, 6.0
        %v659 = vmin.f32 %v639, 6.0
        %v660 = vmin.f32 %v640, 6.0
        %v661 = vmin.f32 %v641, 6.0
        %v662 = vpack.c.bf16 %v643, %v642
        %v663 = vpack.c.bf16 %v645, %v644
        %v664 = vpack.c.bf16 %v647, %v646
        %v665 = vpack.c.bf16 %v649, %v648
        %v666 = vpack.c.bf16 %v651, %v650
        %v667 = vpack.c.bf16 %v653, %v652
        %v668 = vpack.c.bf16 %v655, %v654
        %v669 = vpack.c.bf16 %v657, %v656
        %v670 = vpack.c.bf16 %v659, %v658
        %v671 = vpack.c.bf16 %v661, %v660
        %v682 = vunpack.c.l.b16 %v662
        %v683 = vunpack.c.h.b16 %v662
        %v684 = vunpack.c.l.b16 %v663
        %v685 = vunpack.c.h.b16 %v663
        %v686 = vunpack.c.l.b16 %v664
        %v687 = vunpack.c.h.b16 %v664
        %v688 = vunpack.c.l.b16 %v665
        %v689 = vunpack.c.h.b16 %v665
        %v690 = vunpack.c.l.b16 %v666
        %v691 = vunpack.c.h.b16 %v666
        %v692 = vunpack.c.l.b16 %v667
        %v693 = vunpack.c.h.b16 %v667
        %v694 = vunpack.c.l.b16 %v668
        %v695 = vunpack.c.h.b16 %v668
        %v696 = vunpack.c.l.b16 %v669
        %v697 = vunpack.c.h.b16 %v669
        %v698 = vunpack.c.l.b16 %v670
        %v699 = vunpack.c.h.b16 %v670
        %v700 = vunpack.c.l.b16 %v671
        %v701 = vunpack.c.h.b16 %v671
        %v702 = vpack.c.b16 %v682, %v682
        %v703 = vpack.c.b16 %v683, %v683
        %v704 = vpack.c.b16 %v684, %v684
        %v705 = vpack.c.b16 %v685, %v685
        %v706 = vpack.c.b16 %v686, %v686
        %v707 = vpack.c.b16 %v687, %v687
        %v708 = vpack.c.b16 %v688, %v688
        %v709 = vpack.c.b16 %v689, %v689
        %v710 = vpack.c.b16 %v690, %v690
        %v711 = vpack.c.b16 %v691, %v691
        %v712 = vpack.c.b16 %v692, %v692
        %v713 = vpack.c.b16 %v693, %v693
        %v714 = vpack.c.b16 %v694, %v694
        %v715 = vpack.c.b16 %v695, %v695
        %v716 = vpack.c.b16 %v696, %v696
        %v717 = vpack.c.b16 %v697, %v697
        %v718 = vpack.c.b16 %v698, %v698
        %v719 = vpack.c.b16 %v699, %v699
        %v720 = vpack.c.b16 %v700, %v700
        %v721 = vpack.c.b16 %v701, %v701
        %vm722 = vsmask.f32 256
        %vm723 = vsmask.f32 4368
        %vm724 = vmor %vm722, %vm723
        %v726 = vshrl.u32 %v702, 16
        %v728 = vrot.slane %v726, 7
        %v729 = vshll.u32 %v702, 16
        %v731 = vor.u32 %v728, %v729
        %v732 = vrot.slane %v728, 4
        %v734 = vshrl.u32 %v703, 16
        %v736 = vrot.slane %v734, 7
        %v737 = vshll.u32 %v703, 16
        %v739 = vor.u32 %v736, %v737
        %v740 = vsel %vm724, %v732, %v739
        %v741 = vrot.slane %v736, 4
        %v743 = vshrl.u32 %v704, 16
        %v745 = vrot.slane %v743, 7
        %v746 = vshll.u32 %v704, 16
        %v748 = vor.u32 %v745, %v746
        %v749 = vrot.slane %v745, 4
        %v751 = vshrl.u32 %v705, 16
        %v753 = vrot.slane %v751, 7
        %v754 = vshll.u32 %v705, 16
        %v756 = vor.u32 %v753, %v754
        %v757 = vsel %vm724, %v749, %v756
        %v758 = vrot.slane %v753, 4
        %v760 = vshrl.u32 %v706, 16
        %v762 = vrot.slane %v760, 7
        %v763 = vshll.u32 %v706, 16
        %v765 = vor.u32 %v762, %v763
        %v766 = vrot.slane %v762, 4
        %v768 = vshrl.u32 %v707, 16
        %v770 = vrot.slane %v768, 7
        %v771 = vshll.u32 %v707, 16
        %v773 = vor.u32 %v770, %v771
        %v774 = vsel %vm724, %v766, %v773
        %v775 = vrot.slane %v770, 4
        %v777 = vshrl.u32 %v708, 16
        %v779 = vrot.slane %v777, 7
        %v780 = vshll.u32 %v708, 16
        %v782 = vor.u32 %v779, %v780
        %v783 = vrot.slane %v779, 4
        %v785 = vshrl.u32 %v709, 16
        %v787 = vrot.slane %v785, 7
        %v788 = vshll.u32 %v709, 16
        %v790 = vor.u32 %v787, %v788
        %v791 = vsel %vm724, %v783, %v790
        %v792 = vrot.slane %v787, 4
        %v794 = vshrl.u32 %v710, 16
        %v796 = vrot.slane %v794, 7
        %v797 = vshll.u32 %v710, 16
        %v799 = vor.u32 %v796, %v797
        %v800 = vrot.slane %v796, 4
        %v802 = vshrl.u32 %v711, 16
        %v804 = vrot.slane %v802, 7
        %v805 = vshll.u32 %v711, 16
        %v807 = vor.u32 %v804, %v805
        %v808 = vsel %vm724, %v800, %v807
        %v809 = vrot.slane %v804, 4
        %v811 = vshrl.u32 %v712, 16
        %v813 = vrot.slane %v811, 7
        %v814 = vshll.u32 %v712, 16
        %v816 = vor.u32 %v813, %v814
        %v817 = vrot.slane %v813, 4
        %v819 = vshrl.u32 %v713, 16
        %v821 = vrot.slane %v819, 7
        %v822 = vshll.u32 %v713, 16
        %v824 = vor.u32 %v821, %v822
        %v825 = vsel %vm724, %v817, %v824
        %v826 = vrot.slane %v821, 4
        %v828 = vshrl.u32 %v714, 16
        %v830 = vrot.slane %v828, 7
        %v831 = vshll.u32 %v714, 16
        %v833 = vor.u32 %v830, %v831
        %v834 = vrot.slane %v830, 4
        %v836 = vshrl.u32 %v715, 16
        %v838 = vrot.slane %v836, 7
        %v839 = vshll.u32 %v715, 16
        %v841 = vor.u32 %v838, %v839
        %v842 = vsel %vm724, %v834, %v841
        %v843 = vrot.slane %v838, 4
        %v845 = vshrl.u32 %v716, 16
        %v847 = vrot.slane %v845, 7
        %v848 = vshll.u32 %v716, 16
        %v850 = vor.u32 %v847, %v848
        %v851 = vrot.slane %v847, 4
        %v853 = vshrl.u32 %v717, 16
        %v855 = vrot.slane %v853, 7
        %v856 = vshll.u32 %v717, 16
        %v858 = vor.u32 %v855, %v856
        %v859 = vsel %vm724, %v851, %v858
        %v860 = vrot.slane %v855, 4
        %v862 = vshrl.u32 %v718, 16
        %v864 = vrot.slane %v862, 7
        %v865 = vshll.u32 %v718, 16
        %v867 = vor.u32 %v864, %v865
        %v868 = vrot.slane %v864, 4
        %v870 = vshrl.u32 %v719, 16
        %v872 = vrot.slane %v870, 7
        %v873 = vshll.u32 %v719, 16
        %v875 = vor.u32 %v872, %v873
        %v876 = vsel %vm724, %v868, %v875
        %v877 = vrot.slane %v872, 4
        %v879 = vshrl.u32 %v720, 16
        %v881 = vrot.slane %v879, 7
        %v882 = vshll.u32 %v720, 16
        %v884 = vor.u32 %v881, %v882
        %v885 = vrot.slane %v881, 4
        %v887 = vshrl.u32 %v721, 16
        %v889 = vrot.slane %v887, 7
        %v890 = vshll.u32 %v721, 16
        %v892 = vor.u32 %v889, %v890
        %v893 = vsel %vm724, %v885, %v892
        %v894 = vrot.slane %v889, 4
        %vm925 = vcmask 1043456
        %vm926 = vsmask.f32 7938
        %vm927 = vmand %vm925, %vm926
        %v928 = vld [vmem:[#allocation2] sm:$0xf]
        %v929 = vsel %vm927, %v731, %v928
        %930 = vst [vmem:[#allocation2] sm:$0xf] %v929
        %931 = vst [vmem:[#allocation2 + $0x4] sm:$0xf] %v740
        %vm932 = vcmask 1040384
        %vm933 = vmand %vm932, %vm722
        %v934 = vld [vmem:[#allocation2 + $0x8] sm:$0x1]
        %v935 = vsel %vm933, %v741, %v934
        %936 = vst [vmem:[#allocation2 + $0x8] sm:$0x1] %v935
        %v937 = vld [vmem:[#allocation2 + $0xc] sm:$0xf]
        %v938 = vsel %vm927, %v748, %v937
        %939 = vst [vmem:[#allocation2 + $0xc] sm:$0xf] %v938
        %940 = vst [vmem:[#allocation2 + $0x10] sm:$0xf] %v757
        %v941 = vld [vmem:[#allocation2 + $0x14] sm:$0x1]
        %v942 = vsel %vm933, %v758, %v941
        %943 = vst [vmem:[#allocation2 + $0x14] sm:$0x1] %v942
        %v944 = vld [vmem:[#allocation2 + $0x18] sm:$0xf]
        %v945 = vsel %vm927, %v765, %v944
        %946 = vst [vmem:[#allocation2 + $0x18] sm:$0xf] %v945
        %947 = vst [vmem:[#allocation2 + $0x1c] sm:$0xf] %v774
        %v948 = vld [vmem:[#allocation2 + $0x20] sm:$0x1]
        %v949 = vsel %vm933, %v775, %v948
        %950 = vst [vmem:[#allocation2 + $0x20] sm:$0x1] %v949
        %v951 = vld [vmem:[#allocation2 + $0x24] sm:$0xf]
        %v952 = vsel %vm927, %v782, %v951
        %953 = vst [vmem:[#allocation2 + $0x24] sm:$0xf] %v952
        %954 = vst [vmem:[#allocation2 + $0x28] sm:$0xf] %v791
        %v955 = vld [vmem:[#allocation2 + $0x2c] sm:$0x1]
        %v956 = vsel %vm933, %v792, %v955
        %957 = vst [vmem:[#allocation2 + $0x2c] sm:$0x1] %v956
        %v958 = vld [vmem:[#allocation2 + $0x30] sm:$0xf]
        %v959 = vsel %vm927, %v799, %v958
        %960 = vst [vmem:[#allocation2 + $0x30] sm:$0xf] %v959
        %961 = vst [vmem:[#allocation2 + $0x34] sm:$0xf] %v808
        %v962 = vld [vmem:[#allocation2 + $0x38] sm:$0x1]
        %v963 = vsel %vm933, %v809, %v962
        %964 = vst [vmem:[#allocation2 + $0x38] sm:$0x1] %v963
        %v965 = vld [vmem:[#allocation2 + $0x3c] sm:$0xf]
        %v966 = vsel %vm927, %v816, %v965
        %967 = vst [vmem:[#allocation2 + $0x3c] sm:$0xf] %v966
        %968 = vst [vmem:[#allocation2 + $0x40] sm:$0xf] %v825
        %v969 = vld [vmem:[#allocation2 + $0x44] sm:$0x1]
        %v970 = vsel %vm933, %v826, %v969
        %971 = vst [vmem:[#allocation2 + $0x44] sm:$0x1] %v970
        %v972 = vld [vmem:[#allocation2 + $0x48] sm:$0xf]
        %v973 = vsel %vm927, %v833, %v972
        %974 = vst [vmem:[#allocation2 + $0x48] sm:$0xf] %v973
        %975 = vst [vmem:[#allocation2 + $0x4c] sm:$0xf] %v842
        %v976 = vld [vmem:[#allocation2 + $0x50] sm:$0x1]
        %v977 = vsel %vm933, %v843, %v976
        %978 = vst [vmem:[#allocation2 + $0x50] sm:$0x1] %v977
        %v979 = vld [vmem:[#allocation2 + $0x54] sm:$0xf]
        %v980 = vsel %vm927, %v850, %v979
        %981 = vst [vmem:[#allocation2 + $0x54] sm:$0xf] %v980
        %982 = vst [vmem:[#allocation2 + $0x58] sm:$0xf] %v859
        %v983 = vld [vmem:[#allocation2 + $0x5c] sm:$0x1]
        %v984 = vsel %vm933, %v860, %v983
        %985 = vst [vmem:[#allocation2 + $0x5c] sm:$0x1] %v984
        %v986 = vld [vmem:[#allocation2 + $0x60] sm:$0xf]
        %v987 = vsel %vm927, %v867, %v986
        %988 = vst [vmem:[#allocation2 + $0x60] sm:$0xf] %v987
        %989 = vst [vmem:[#allocation2 + $0x64] sm:$0xf] %v876
        %v990 = vld [vmem:[#allocation2 + $0x68] sm:$0x1]
        %v991 = vsel %vm933, %v877, %v990
        %992 = vst [vmem:[#allocation2 + $0x68] sm:$0x1] %v991
        %v993 = vld [vmem:[#allocation2 + $0x6c] sm:$0xf]
        %v994 = vsel %vm927, %v884, %v993
        %995 = vst [vmem:[#allocation2 + $0x6c] sm:$0xf] %v994
        %996 = vst [vmem:[#allocation2 + $0x70] sm:$0xf] %v893
        %v997 = vld [vmem:[#allocation2 + $0x74] sm:$0x1]
        %v998 = vsel %vm933, %v894, %v997
        %999 = vst [vmem:[#allocation2 + $0x74] sm:$0x1] %v998
        %v1000 = vld [vmem:[#allocation2] sm:$0x1]
        %v1001 = vsel %vm933, 0, %v1000
        %1002 = vst [vmem:[#allocation2] sm:$0x1] %v1001
        %v1003 = vld [vmem:[#allocation2 + $0xc] sm:$0x1]
        %v1004 = vsel %vm933, 0, %v1003
        %1005 = vst [vmem:[#allocation2 + $0xc] sm:$0x1] %v1004
        %v1006 = vld [vmem:[#allocation2 + $0x18] sm:$0x1]
        %v1007 = vsel %vm933, 0, %v1006
        %1008 = vst [vmem:[#allocation2 + $0x18] sm:$0x1] %v1007
        %v1009 = vld [vmem:[#allocation2 + $0x24] sm:$0x1]
        %v1010 = vsel %vm933, 0, %v1009
        %1011 = vst [vmem:[#allocation2 + $0x24] sm:$0x1] %v1010
        %v1012 = vld [vmem:[#allocation2 + $0x30] sm:$0x1]
        %v1013 = vsel %vm933, 0, %v1012
        %1014 = vst [vmem:[#allocation2 + $0x30] sm:$0x1] %v1013
        %v1015 = vld [vmem:[#allocation2 + $0x3c] sm:$0x1]
        %v1016 = vsel %vm933, 0, %v1015
        %1017 = vst [vmem:[#allocation2 + $0x3c] sm:$0x1] %v1016
        %v1018 = vld [vmem:[#allocation2 + $0x48] sm:$0x1]
        %v1019 = vsel %vm933, 0, %v1018
        %1020 = vst [vmem:[#allocation2 + $0x48] sm:$0x1] %v1019
        %v1021 = vld [vmem:[#allocation2 + $0x54] sm:$0x1]
        %v1022 = vsel %vm933, 0, %v1021
        %1023 = vst [vmem:[#allocation2 + $0x54] sm:$0x1] %v1022
        %v1024 = vld [vmem:[#allocation2 + $0x60] sm:$0x1]
        %v1025 = vsel %vm933, 0, %v1024
        %1026 = vst [vmem:[#allocation2 + $0x60] sm:$0x1] %v1025
        %v1027 = vld [vmem:[#allocation2 + $0x6c] sm:$0x1]
        %v1028 = vsel %vm933, 0, %v1027
        %1029 = vst [vmem:[#allocation2 + $0x6c] sm:$0x1] %v1028
        %vm1030 = vmand %vm932, %vm926
        %v1031 = vld [vmem:[#allocation2 + $0x8] sm:$0x1]
        %v1032 = vsel %vm1030, 0, %v1031
        %1033 = vst [vmem:[#allocation2 + $0x8] sm:$0x1] %v1032
        %v1034 = vld [vmem:[#allocation2 + $0x14] sm:$0x1]
        %v1035 = vsel %vm1030, 0, %v1034
        %1036 = vst [vmem:[#allocation2 + $0x14] sm:$0x1] %v1035
        %v1037 = vld [vmem:[#allocation2 + $0x20] sm:$0x1]
        %v1038 = vsel %vm1030, 0, %v1037
        %1039 = vst [vmem:[#allocation2 + $0x20] sm:$0x1] %v1038
        %v1040 = vld [vmem:[#allocation2 + $0x2c] sm:$0x1]
        %v1041 = vsel %vm1030, 0, %v1040
        %1042 = vst [vmem:[#allocation2 + $0x2c] sm:$0x1] %v1041
        %v1043 = vld [vmem:[#allocation2 + $0x38] sm:$0x1]
        %v1044 = vsel %vm1030, 0, %v1043
        %1045 = vst [vmem:[#allocation2 + $0x38] sm:$0x1] %v1044
        %v1046 = vld [vmem:[#allocation2 + $0x44] sm:$0x1]
        %v1047 = vsel %vm1030, 0, %v1046
        %1048 = vst [vmem:[#allocation2 + $0x44] sm:$0x1] %v1047
        %v1049 = vld [vmem:[#allocation2 + $0x50] sm:$0x1]
        %v1050 = vsel %vm1030, 0, %v1049
        %1051 = vst [vmem:[#allocation2 + $0x50] sm:$0x1] %v1050
        %v1052 = vld [vmem:[#allocation2 + $0x5c] sm:$0x1]
        %v1053 = vsel %vm1030, 0, %v1052
        %1054 = vst [vmem:[#allocation2 + $0x5c] sm:$0x1] %v1053
        %v1055 = vld [vmem:[#allocation2 + $0x68] sm:$0x1]
        %v1056 = vsel %vm1030, 0, %v1055
        %1057 = vst [vmem:[#allocation2 + $0x68] sm:$0x1] %v1056
        %v1058 = vld [vmem:[#allocation2 + $0x74] sm:$0x1]
        %v1059 = vsel %vm1030, 0, %v1058
        %1060 = vst [vmem:[#allocation2 + $0x74] sm:$0x1] %v1059
        %p1061 = scmp.eq.s32.totalorder %s32, 0
        // Predicated region
        $region77: #{tpu_custom_call.1} parent=47 // pred_check
          %p1062 = pneg %p1061
        $region78: #{tpu_custom_call.1} parent=47 // pred_check_branch
          %1064 = sbr.rel (%p1062) target = $region80
        $region79: #{tpu_custom_call.1} parent=47 // pred_region
          %1065 = vst [vmem:[#allocation2] sm:$0xf] 0
          %1066 = vst [vmem:[#allocation2 + $0x4] sm:$0xf] 0
          %1067 = vst [vmem:[#allocation2 + $0x8] sm:$0x1] 0
        $region80: #{tpu_custom_call.1} parent=47 // pred_fallthru
          _
        %p1068 = scmp.eq.s32.totalorder %s32, 1
        // Predicated region
        $region81: #{tpu_custom_call.1} parent=47 // pred_check
          %p1069 = pneg %p1068
        $region82: #{tpu_custom_call.1} parent=47 // pred_check_branch
          %1071 = sbr.rel (%p1069) target = $region84
        $region83: #{tpu_custom_call.1} parent=47 // pred_region
          %s1072 = scalar_lea.vmem [#allocation2], 108
          %1073 = vst [vmem:[%s1072] sm:$0xf] 0
          %1074 = vst [vmem:[%s1072 + $0x4] sm:$0xf] 0
          %1075 = vst [vmem:[%s1072 + $0x8] sm:$0x1] 0
        $region84: #{tpu_custom_call.1} parent=47 // pred_fallthru
          _
        %v1076 = vld [vmem:[#allocation9] sm:$0x7]
        %v1077 = vld [vmem:[#allocation9 + $0x4] sm:$0x7]
        %v1078 = vld [vmem:[#allocation9 + $0x8] sm:$0x7]
        %v1079 = vld [vmem:[#allocation11] sm:$0x1]
        %v1080 = vld [vmem:[#allocation2] sm:$0xf]
        %v1081 = vld [vmem:[#allocation2 + $0x4] sm:$0xf]
        %v1082 = vld [vmem:[#allocation2 + $0xc] sm:$0xf]
        %v1083 = vld [vmem:[#allocation2 + $0x10] sm:$0xf]
        %v1084 = vld [vmem:[#allocation2 + $0x18] sm:$0xf]
        %v1085 = vld [vmem:[#allocation2 + $0x1c] sm:$0xf]
        %v1086 = vld [vmem:[#allocation2 + $0x24] sm:$0xf]
        %v1087 = vld [vmem:[#allocation2 + $0x28] sm:$0xf]
        %v1088 = vld [vmem:[#allocation2 + $0x30] sm:$0xf]
        %v1089 = vld [vmem:[#allocation2 + $0x34] sm:$0xf]
        %v1090 = vld [vmem:[#allocation2 + $0x3c] sm:$0xf]
        %v1091 = vld [vmem:[#allocation2 + $0x40] sm:$0xf]
        %v1092 = vld [vmem:[#allocation2 + $0x48] sm:$0xf]
        %v1093 = vld [vmem:[#allocation2 + $0x4c] sm:$0xf]
        %v1094 = vld [vmem:[#allocation2 + $0x54] sm:$0xf]
        %v1095 = vld [vmem:[#allocation2 + $0x58] sm:$0xf]
        %v1096 = vunpack.c.l.bf16 %v1080
        %v1097 = vunpack.c.l.bf16 %v1081
        %v1098 = vunpack.c.l.bf16 %v1082
        %v1099 = vunpack.c.l.bf16 %v1083
        %v1100 = vunpack.c.l.bf16 %v1084
        %v1101 = vunpack.c.l.bf16 %v1085
        %v1102 = vunpack.c.l.bf16 %v1086
        %v1103 = vunpack.c.l.bf16 %v1087
        %v1104 = vunpack.c.l.bf16 %v1088
        %v1105 = vunpack.c.l.bf16 %v1089
        %v1106 = vunpack.c.l.bf16 %v1090
        %v1107 = vunpack.c.l.bf16 %v1091
        %v1108 = vunpack.c.l.bf16 %v1092
        %v1109 = vunpack.c.l.bf16 %v1093
        %v1110 = vunpack.c.l.bf16 %v1094
        %v1111 = vunpack.c.l.bf16 %v1095
        %v1112 = vlaneseq
        %v1113 = vshrl.u32 %v1112, 7
        %v1114 = vsub.s32 0, %v1113
        %v1115 = vrot.slane %v1076, %v1114
        %v1116 = vmul.f32 %v1096, %v1115
        %v1117 = vmul.f32 %v1097, %v1115
        %v1118 = vmul.f32 %v1098, %v1115
        %v1119 = vmul.f32 %v1099, %v1115
        %v1120 = vmul.f32 %v1100, %v1115
        %v1121 = vmul.f32 %v1101, %v1115
        %v1122 = vmul.f32 %v1102, %v1115
        %v1123 = vmul.f32 %v1103, %v1115
        %v1124 = vmul.f32 %v1104, %v1115
        %v1125 = vmul.f32 %v1105, %v1115
        %v1126 = vmul.f32 %v1106, %v1115
        %v1127 = vmul.f32 %v1107, %v1115
        %v1128 = vmul.f32 %v1108, %v1115
        %v1129 = vmul.f32 %v1109, %v1115
        %v1130 = vmul.f32 %v1110, %v1115
        %v1131 = vmul.f32 %v1111, %v1115
        %v1133 = vlaneseq
        %v1134 = vshrl.u32 %v1133, 7
        %v1135 = vsub.s32 0, %v1134
        %v1136 = vrot.slane %v1079, %v1135
        %v1138 = vadd.f32 %v1116, %v1136
        %v1139 = vadd.f32 %v1117, %v1136
        %v1140 = vadd.f32 %v1118, %v1136
        %v1141 = vadd.f32 %v1119, %v1136
        %v1142 = vadd.f32 %v1120, %v1136
        %v1143 = vadd.f32 %v1121, %v1136
        %v1144 = vadd.f32 %v1122, %v1136
        %v1145 = vadd.f32 %v1123, %v1136
        %v1146 = vadd.f32 %v1124, %v1136
        %v1147 = vadd.f32 %v1125, %v1136
        %v1148 = vadd.f32 %v1126, %v1136
        %v1149 = vadd.f32 %v1127, %v1136
        %v1150 = vadd.f32 %v1128, %v1136
        %v1151 = vadd.f32 %v1129, %v1136
        %v1152 = vadd.f32 %v1130, %v1136
        %v1153 = vadd.f32 %v1131, %v1136
        %v1154 = vld [vmem:[#allocation2 + $0x8] sm:$0x1]
        %v1155 = vld [vmem:[#allocation2 + $0x14] sm:$0x1]
        %v1156 = vld [vmem:[#allocation2 + $0x20] sm:$0x1]
        %v1157 = vld [vmem:[#allocation2 + $0x2c] sm:$0x1]
        %v1158 = vld [vmem:[#allocation2 + $0x38] sm:$0x1]
        %v1159 = vld [vmem:[#allocation2 + $0x44] sm:$0x1]
        %v1160 = vld [vmem:[#allocation2 + $0x50] sm:$0x1]
        %v1161 = vld [vmem:[#allocation2 + $0x5c] sm:$0x1]
        %v1162 = vunpack.c.l.bf16 %v1154
        %v1163 = vunpack.c.l.bf16 %v1155
        %v1164 = vunpack.c.l.bf16 %v1156
        %v1165 = vunpack.c.l.bf16 %v1157
        %v1166 = vunpack.c.l.bf16 %v1158
        %v1167 = vunpack.c.l.bf16 %v1159
        %v1168 = vunpack.c.l.bf16 %v1160
        %v1169 = vunpack.c.l.bf16 %v1161
        %v1170 = vlaneseq
        %v1171 = vshrl.u32 %v1170, 7
        %v1172 = vsub.s32 1, %v1171
        %v1173 = vrot.slane %v1076, %v1172
        %v1174 = vmul.f32 %v1096, %v1173
        %v1175 = vmul.f32 %v1097, %v1173
        %v1176 = vmul.f32 %v1162, %v1173
        %v1177 = vmul.f32 %v1098, %v1173
        %v1178 = vmul.f32 %v1099, %v1173
        %v1179 = vmul.f32 %v1163, %v1173
        %v1180 = vmul.f32 %v1100, %v1173
        %v1181 = vmul.f32 %v1101, %v1173
        %v1182 = vmul.f32 %v1164, %v1173
        %v1183 = vmul.f32 %v1102, %v1173
        %v1184 = vmul.f32 %v1103, %v1173
        %v1185 = vmul.f32 %v1165, %v1173
        %v1186 = vmul.f32 %v1104, %v1173
        %v1187 = vmul.f32 %v1105, %v1173
        %v1188 = vmul.f32 %v1166, %v1173
        %v1189 = vmul.f32 %v1106, %v1173
        %v1190 = vmul.f32 %v1107, %v1173
        %v1191 = vmul.f32 %v1167, %v1173
        %v1192 = vmul.f32 %v1108, %v1173
        %v1193 = vmul.f32 %v1109, %v1173
        %v1194 = vmul.f32 %v1168, %v1173
        %v1195 = vmul.f32 %v1110, %v1173
        %v1196 = vmul.f32 %v1111, %v1173
        %v1197 = vmul.f32 %v1169, %v1173
        %vm1222 = vcmask 1046528
        %v1223 = vrot.slane %v1174, 1
        %v1224 = vrot.slane %v1175, 1
        %v1225 = vsel %vm1222, %v1223, %v1224
        %v1226 = vrot.slane %v1176, 1
        %v1227 = vsel %vm1222, %v1224, %v1226
        %v1228 = vrot.slane %v1177, 1
        %v1229 = vrot.slane %v1178, 1
        %v1230 = vsel %vm1222, %v1228, %v1229
        %v1231 = vrot.slane %v1179, 1
        %v1232 = vsel %vm1222, %v1229, %v1231
        %v1233 = vrot.slane %v1180, 1
        %v1234 = vrot.slane %v1181, 1
        %v1235 = vsel %vm1222, %v1233, %v1234
        %v1236 = vrot.slane %v1182, 1
        %v1237 = vsel %vm1222, %v1234, %v1236
        %v1238 = vrot.slane %v1183, 1
        %v1239 = vrot.slane %v1184, 1
        %v1240 = vsel %vm1222, %v1238, %v1239
        %v1241 = vrot.slane %v1185, 1
        %v1242 = vsel %vm1222, %v1239, %v1241
        %v1243 = vrot.slane %v1186, 1
        %v1244 = vrot.slane %v1187, 1
        %v1245 = vsel %vm1222, %v1243, %v1244
        %v1246 = vrot.slane %v1188, 1
        %v1247 = vsel %vm1222, %v1244, %v1246
        %v1248 = vrot.slane %v1189, 1
        %v1249 = vrot.slane %v1190, 1
        %v1250 = vsel %vm1222, %v1248, %v1249
        %v1251 = vrot.slane %v1191, 1
        %v1252 = vsel %vm1222, %v1249, %v1251
        %v1253 = vrot.slane %v1192, 1
        %v1254 = vrot.slane %v1193, 1
        %v1255 = vsel %vm1222, %v1253, %v1254
        %v1256 = vrot.slane %v1194, 1
        %v1257 = vsel %vm1222, %v1254, %v1256
        %v1258 = vrot.slane %v1195, 1
        %v1259 = vrot.slane %v1196, 1
        %v1260 = vsel %vm1222, %v1258, %v1259
        %v1261 = vrot.slane %v1197, 1
        %v1262 = vsel %vm1222, %v1259, %v1261
        %v1279 = vadd.f32 %v1138, %v1225
        %v1280 = vadd.f32 %v1139, %v1227
        %v1281 = vadd.f32 %v1140, %v1230
        %v1282 = vadd.f32 %v1141, %v1232
        %v1283 = vadd.f32 %v1142, %v1235
        %v1284 = vadd.f32 %v1143, %v1237
        %v1285 = vadd.f32 %v1144, %v1240
        %v1286 = vadd.f32 %v1145, %v1242
        %v1287 = vadd.f32 %v1146, %v1245
        %v1288 = vadd.f32 %v1147, %v1247
        %v1289 = vadd.f32 %v1148, %v1250
        %v1290 = vadd.f32 %v1149, %v1252
        %v1291 = vadd.f32 %v1150, %v1255
        %v1292 = vadd.f32 %v1151, %v1257
        %v1293 = vadd.f32 %v1152, %v1260
        %v1294 = vadd.f32 %v1153, %v1262
        %v1295 = vld [vmem:[#allocation2] sm:$0xe]
        %v1296 = vld [vmem:[#allocation2 + $0xc] sm:$0xe]
        %v1297 = vld [vmem:[#allocation2 + $0x18] sm:$0xe]
        %v1298 = vld [vmem:[#allocation2 + $0x24] sm:$0xe]
        %v1299 = vld [vmem:[#allocation2 + $0x30] sm:$0xe]
        %v1300 = vld [vmem:[#allocation2 + $0x3c] sm:$0xe]
        %v1301 = vld [vmem:[#allocation2 + $0x48] sm:$0xe]
        %v1302 = vld [vmem:[#allocation2 + $0x54] sm:$0xe]
        %v1303 = vunpack.c.l.bf16 %v1295
        %v1304 = vunpack.c.l.bf16 %v1296
        %v1305 = vunpack.c.l.bf16 %v1297
        %v1306 = vunpack.c.l.bf16 %v1298
        %v1307 = vunpack.c.l.bf16 %v1299
        %v1308 = vunpack.c.l.bf16 %v1300
        %v1309 = vunpack.c.l.bf16 %v1301
        %v1310 = vunpack.c.l.bf16 %v1302
        %v1311 = vlaneseq
        %v1312 = vshrl.u32 %v1311, 7
        %v1313 = vsub.s32 2, %v1312
        %v1314 = vrot.slane %v1076, %v1313
        %v1315 = vmul.f32 %v1303, %v1314
        %v1316 = vmul.f32 %v1097, %v1314
        %v1317 = vmul.f32 %v1162, %v1314
        %v1318 = vmul.f32 %v1304, %v1314
        %v1319 = vmul.f32 %v1099, %v1314
        %v1320 = vmul.f32 %v1163, %v1314
        %v1321 = vmul.f32 %v1305, %v1314
        %v1322 = vmul.f32 %v1101, %v1314
        %v1323 = vmul.f32 %v1164, %v1314
        %v1324 = vmul.f32 %v1306, %v1314
        %v1325 = vmul.f32 %v1103, %v1314
        %v1326 = vmul.f32 %v1165, %v1314
        %v1327 = vmul.f32 %v1307, %v1314
        %v1328 = vmul.f32 %v1105, %v1314
        %v1329 = vmul.f32 %v1166, %v1314
        %v1330 = vmul.f32 %v1308, %v1314
        %v1331 = vmul.f32 %v1107, %v1314
        %v1332 = vmul.f32 %v1167, %v1314
        %v1333 = vmul.f32 %v1309, %v1314
        %v1334 = vmul.f32 %v1109, %v1314
        %v1335 = vmul.f32 %v1168, %v1314
        %v1336 = vmul.f32 %v1310, %v1314
        %v1337 = vmul.f32 %v1111, %v1314
        %v1338 = vmul.f32 %v1169, %v1314
        %vm1363 = vcmask 1045504
        %v1364 = vrot.slane %v1315, 2
        %v1365 = vrot.slane %v1316, 2
        %v1366 = vsel %vm1363, %v1364, %v1365
        %v1367 = vrot.slane %v1317, 2
        %v1368 = vsel %vm1363, %v1365, %v1367
        %v1369 = vrot.slane %v1318, 2
        %v1370 = vrot.slane %v1319, 2
        %v1371 = vsel %vm1363, %v1369, %v1370
        %v1372 = vrot.slane %v1320, 2
        %v1373 = vsel %vm1363, %v1370, %v1372
        %v1374 = vrot.slane %v1321, 2
        %v1375 = vrot.slane %v1322, 2
        %v1376 = vsel %vm1363, %v1374, %v1375
        %v1377 = vrot.slane %v1323, 2
        %v1378 = vsel %vm1363, %v1375, %v1377
        %v1379 = vrot.slane %v1324, 2
        %v1380 = vrot.slane %v1325, 2
        %v1381 = vsel %vm1363, %v1379, %v1380
        %v1382 = vrot.slane %v1326, 2
        %v1383 = vsel %vm1363, %v1380, %v1382
        %v1384 = vrot.slane %v1327, 2
        %v1385 = vrot.slane %v1328, 2
        %v1386 = vsel %vm1363, %v1384, %v1385
        %v1387 = vrot.slane %v1329, 2
        %v1388 = vsel %vm1363, %v1385, %v1387
        %v1389 = vrot.slane %v1330, 2
        %v1390 = vrot.slane %v1331, 2
        %v1391 = vsel %vm1363, %v1389, %v1390
        %v1392 = vrot.slane %v1332, 2
        %v1393 = vsel %vm1363, %v1390, %v1392
        %v1394 = vrot.slane %v1333, 2
        %v1395 = vrot.slane %v1334, 2
        %v1396 = vsel %vm1363, %v1394, %v1395
        %v1397 = vrot.slane %v1335, 2
        %v1398 = vsel %vm1363, %v1395, %v1397
        %v1399 = vrot.slane %v1336, 2
        %v1400 = vrot.slane %v1337, 2
        %v1401 = vsel %vm1363, %v1399, %v1400
        %v1402 = vrot.slane %v1338, 2
        %v1403 = vsel %vm1363, %v1400, %v1402
        %v1420 = vadd.f32 %v1279, %v1366
        %v1421 = vadd.f32 %v1280, %v1368
        %v1422 = vadd.f32 %v1281, %v1371
        %v1423 = vadd.f32 %v1282, %v1373
        %v1424 = vadd.f32 %v1283, %v1376
        %v1425 = vadd.f32 %v1284, %v1378
        %v1426 = vadd.f32 %v1285, %v1381
        %v1427 = vadd.f32 %v1286, %v1383
        %v1428 = vadd.f32 %v1287, %v1386
        %v1429 = vadd.f32 %v1288, %v1388
        %v1430 = vadd.f32 %v1289, %v1391
        %v1431 = vadd.f32 %v1290, %v1393
        %v1432 = vadd.f32 %v1291, %v1396
        %v1433 = vadd.f32 %v1292, %v1398
        %v1434 = vadd.f32 %v1293, %v1401
        %v1435 = vadd.f32 %v1294, %v1403
        %s1436 = scalar_lea.vmem [#allocation2], 12
        %v1437 = vld [vmem:[%s1436] sm:$0xf]
        %v1438 = vld [vmem:[%s1436 + $0x4] sm:$0xf]
        %v1439 = vld [vmem:[%s1436 + $0xc] sm:$0xf]
        %v1440 = vld [vmem:[%s1436 + $0x10] sm:$0xf]
        %v1441 = vld [vmem:[%s1436 + $0x18] sm:$0xf]
        %v1442 = vld [vmem:[%s1436 + $0x1c] sm:$0xf]
        %v1443 = vld [vmem:[%s1436 + $0x24] sm:$0xf]
        %v1444 = vld [vmem:[%s1436 + $0x28] sm:$0xf]
        %v1445 = vld [vmem:[%s1436 + $0x30] sm:$0xf]
        %v1446 = vld [vmem:[%s1436 + $0x34] sm:$0xf]
        %v1447 = vld [vmem:[%s1436 + $0x3c] sm:$0xf]
        %v1448 = vld [vmem:[%s1436 + $0x40] sm:$0xf]
        %v1449 = vld [vmem:[%s1436 + $0x48] sm:$0xf]
        %v1450 = vld [vmem:[%s1436 + $0x4c] sm:$0xf]
        %v1451 = vld [vmem:[%s1436 + $0x54] sm:$0xf]
        %v1452 = vld [vmem:[%s1436 + $0x58] sm:$0xf]
        %v1453 = vunpack.c.l.bf16 %v1437
        %v1454 = vunpack.c.l.bf16 %v1438
        %v1455 = vunpack.c.l.bf16 %v1439
        %v1456 = vunpack.c.l.bf16 %v1440
        %v1457 = vunpack.c.l.bf16 %v1441
        %v1458 = vunpack.c.l.bf16 %v1442
        %v1459 = vunpack.c.l.bf16 %v1443
        %v1460 = vunpack.c.l.bf16 %v1444
        %v1461 = vunpack.c.l.bf16 %v1445
        %v1462 = vunpack.c.l.bf16 %v1446
        %v1463 = vunpack.c.l.bf16 %v1447
        %v1464 = vunpack.c.l.bf16 %v1448
        %v1465 = vunpack.c.l.bf16 %v1449
        %v1466 = vunpack.c.l.bf16 %v1450
        %v1467 = vunpack.c.l.bf16 %v1451
        %v1468 = vunpack.c.l.bf16 %v1452
        %v1469 = vlaneseq
        %v1470 = vshrl.u32 %v1469, 7
        %v1471 = vsub.s32 0, %v1470
        %v1472 = vrot.slane %v1077, %v1471
        %v1473 = vmul.f32 %v1453, %v1472
        %v1474 = vmul.f32 %v1454, %v1472
        %v1475 = vmul.f32 %v1455, %v1472
        %v1476 = vmul.f32 %v1456, %v1472
        %v1477 = vmul.f32 %v1457, %v1472
        %v1478 = vmul.f32 %v1458, %v1472
        %v1479 = vmul.f32 %v1459, %v1472
        %v1480 = vmul.f32 %v1460, %v1472
        %v1481 = vmul.f32 %v1461, %v1472
        %v1482 = vmul.f32 %v1462, %v1472
        %v1483 = vmul.f32 %v1463, %v1472
        %v1484 = vmul.f32 %v1464, %v1472
        %v1485 = vmul.f32 %v1465, %v1472
        %v1486 = vmul.f32 %v1466, %v1472
        %v1487 = vmul.f32 %v1467, %v1472
        %v1488 = vmul.f32 %v1468, %v1472
        %v1489 = vadd.f32 %v1420, %v1473
        %v1490 = vadd.f32 %v1421, %v1474
        %v1491 = vadd.f32 %v1422, %v1475
        %v1492 = vadd.f32 %v1423, %v1476
        %v1493 = vadd.f32 %v1424, %v1477
        %v1494 = vadd.f32 %v1425, %v1478
        %v1495 = vadd.f32 %v1426, %v1479
        %v1496 = vadd.f32 %v1427, %v1480
        %v1497 = vadd.f32 %v1428, %v1481
        %v1498 = vadd.f32 %v1429, %v1482
        %v1499 = vadd.f32 %v1430, %v1483
        %v1500 = vadd.f32 %v1431, %v1484
        %v1501 = vadd.f32 %v1432, %v1485
        %v1502 = vadd.f32 %v1433, %v1486
        %v1503 = vadd.f32 %v1434, %v1487
        %v1504 = vadd.f32 %v1435, %v1488
        %v1505 = vld [vmem:[%s1436 + $0x8] sm:$0x1]
        %v1506 = vld [vmem:[%s1436 + $0x14] sm:$0x1]
        %v1507 = vld [vmem:[%s1436 + $0x20] sm:$0x1]
        %v1508 = vld [vmem:[%s1436 + $0x2c] sm:$0x1]
        %v1509 = vld [vmem:[%s1436 + $0x38] sm:$0x1]
        %v1510 = vld [vmem:[%s1436 + $0x44] sm:$0x1]
        %v1511 = vld [vmem:[%s1436 + $0x50] sm:$0x1]
        %v1512 = vld [vmem:[%s1436 + $0x5c] sm:$0x1]
        %v1513 = vunpack.c.l.bf16 %v1505
        %v1514 = vunpack.c.l.bf16 %v1506
        %v1515 = vunpack.c.l.bf16 %v1507
        %v1516 = vunpack.c.l.bf16 %v1508
        %v1517 = vunpack.c.l.bf16 %v1509
        %v1518 = vunpack.c.l.bf16 %v1510
        %v1519 = vunpack.c.l.bf16 %v1511
        %v1520 = vunpack.c.l.bf16 %v1512
        %v1521 = vlaneseq
        %v1522 = vshrl.u32 %v1521, 7
        %v1523 = vsub.s32 1, %v1522
        %v1524 = vrot.slane %v1077, %v1523
        %v1525 = vmul.f32 %v1453, %v1524
        %v1526 = vmul.f32 %v1454, %v1524
        %v1527 = vmul.f32 %v1513, %v1524
        %v1528 = vmul.f32 %v1455, %v1524
        %v1529 = vmul.f32 %v1456, %v1524
        %v1530 = vmul.f32 %v1514, %v1524
        %v1531 = vmul.f32 %v1457, %v1524
        %v1532 = vmul.f32 %v1458, %v1524
        %v1533 = vmul.f32 %v1515, %v1524
        %v1534 = vmul.f32 %v1459, %v1524
        %v1535 = vmul.f32 %v1460, %v1524
        %v1536 = vmul.f32 %v1516, %v1524
        %v1537 = vmul.f32 %v1461, %v1524
        %v1538 = vmul.f32 %v1462, %v1524
        %v1539 = vmul.f32 %v1517, %v1524
        %v1540 = vmul.f32 %v1463, %v1524
        %v1541 = vmul.f32 %v1464, %v1524
        %v1542 = vmul.f32 %v1518, %v1524
        %v1543 = vmul.f32 %v1465, %v1524
        %v1544 = vmul.f32 %v1466, %v1524
        %v1545 = vmul.f32 %v1519, %v1524
        %v1546 = vmul.f32 %v1467, %v1524
        %v1547 = vmul.f32 %v1468, %v1524
        %v1548 = vmul.f32 %v1520, %v1524
        %v1573 = vrot.slane %v1525, 1
        %v1574 = vrot.slane %v1526, 1
        %v1575 = vsel %vm1222, %v1573, %v1574
        %v1576 = vrot.slane %v1527, 1
        %v1577 = vsel %vm1222, %v1574, %v1576
        %v1578 = vrot.slane %v1528, 1
        %v1579 = vrot.slane %v1529, 1
        %v1580 = vsel %vm1222, %v1578, %v1579
        %v1581 = vrot.slane %v1530, 1
        %v1582 = vsel %vm1222, %v1579, %v1581
        %v1583 = vrot.slane %v1531, 1
        %v1584 = vrot.slane %v1532, 1
        %v1585 = vsel %vm1222, %v1583, %v1584
        %v1586 = vrot.slane %v1533, 1
        %v1587 = vsel %vm1222, %v1584, %v1586
        %v1588 = vrot.slane %v1534, 1
        %v1589 = vrot.slane %v1535, 1
        %v1590 = vsel %vm1222, %v1588, %v1589
        %v1591 = vrot.slane %v1536, 1
        %v1592 = vsel %vm1222, %v1589, %v1591
        %v1593 = vrot.slane %v1537, 1
        %v1594 = vrot.slane %v1538, 1
        %v1595 = vsel %vm1222, %v1593, %v1594
        %v1596 = vrot.slane %v1539, 1
        %v1597 = vsel %vm1222, %v1594, %v1596
        %v1598 = vrot.slane %v1540, 1
        %v1599 = vrot.slane %v1541, 1
        %v1600 = vsel %vm1222, %v1598, %v1599
        %v1601 = vrot.slane %v1542, 1
        %v1602 = vsel %vm1222, %v1599, %v1601
        %v1603 = vrot.slane %v1543, 1
        %v1604 = vrot.slane %v1544, 1
        %v1605 = vsel %vm1222, %v1603, %v1604
        %v1606 = vrot.slane %v1545, 1
        %v1607 = vsel %vm1222, %v1604, %v1606
        %v1608 = vrot.slane %v1546, 1
        %v1609 = vrot.slane %v1547, 1
        %v1610 = vsel %vm1222, %v1608, %v1609
        %v1611 = vrot.slane %v1548, 1
        %v1612 = vsel %vm1222, %v1609, %v1611
        %v1629 = vadd.f32 %v1489, %v1575
        %v1630 = vadd.f32 %v1490, %v1577
        %v1631 = vadd.f32 %v1491, %v1580
        %v1632 = vadd.f32 %v1492, %v1582
        %v1633 = vadd.f32 %v1493, %v1585
        %v1634 = vadd.f32 %v1494, %v1587
        %v1635 = vadd.f32 %v1495, %v1590
        %v1636 = vadd.f32 %v1496, %v1592
        %v1637 = vadd.f32 %v1497, %v1595
        %v1638 = vadd.f32 %v1498, %v1597
        %v1639 = vadd.f32 %v1499, %v1600
        %v1640 = vadd.f32 %v1500, %v1602
        %v1641 = vadd.f32 %v1501, %v1605
        %v1642 = vadd.f32 %v1502, %v1607
        %v1643 = vadd.f32 %v1503, %v1610
        %v1644 = vadd.f32 %v1504, %v1612
        %v1645 = vld [vmem:[%s1436] sm:$0xe]
        %v1646 = vld [vmem:[%s1436 + $0xc] sm:$0xe]
        %v1647 = vld [vmem:[%s1436 + $0x18] sm:$0xe]
        %v1648 = vld [vmem:[%s1436 + $0x24] sm:$0xe]
        %v1649 = vld [vmem:[%s1436 + $0x30] sm:$0xe]
        %v1650 = vld [vmem:[%s1436 + $0x3c] sm:$0xe]
        %v1651 = vld [vmem:[%s1436 + $0x48] sm:$0xe]
        %v1652 = vld [vmem:[%s1436 + $0x54] sm:$0xe]
        %v1653 = vunpack.c.l.bf16 %v1645
        %v1654 = vunpack.c.l.bf16 %v1646
        %v1655 = vunpack.c.l.bf16 %v1647
        %v1656 = vunpack.c.l.bf16 %v1648
        %v1657 = vunpack.c.l.bf16 %v1649
        %v1658 = vunpack.c.l.bf16 %v1650
        %v1659 = vunpack.c.l.bf16 %v1651
        %v1660 = vunpack.c.l.bf16 %v1652
        %v1661 = vlaneseq
        %v1662 = vshrl.u32 %v1661, 7
        %v1663 = vsub.s32 2, %v1662
        %v1664 = vrot.slane %v1077, %v1663
        %v1665 = vmul.f32 %v1653, %v1664
        %v1666 = vmul.f32 %v1454, %v1664
        %v1667 = vmul.f32 %v1513, %v1664
        %v1668 = vmul.f32 %v1654, %v1664
        %v1669 = vmul.f32 %v1456, %v1664
        %v1670 = vmul.f32 %v1514, %v1664
        %v1671 = vmul.f32 %v1655, %v1664
        %v1672 = vmul.f32 %v1458, %v1664
        %v1673 = vmul.f32 %v1515, %v1664
        %v1674 = vmul.f32 %v1656, %v1664
        %v1675 = vmul.f32 %v1460, %v1664
        %v1676 = vmul.f32 %v1516, %v1664
        %v1677 = vmul.f32 %v1657, %v1664
        %v1678 = vmul.f32 %v1462, %v1664
        %v1679 = vmul.f32 %v1517, %v1664
        %v1680 = vmul.f32 %v1658, %v1664
        %v1681 = vmul.f32 %v1464, %v1664
        %v1682 = vmul.f32 %v1518, %v1664
        %v1683 = vmul.f32 %v1659, %v1664
        %v1684 = vmul.f32 %v1466, %v1664
        %v1685 = vmul.f32 %v1519, %v1664
        %v1686 = vmul.f32 %v1660, %v1664
        %v1687 = vmul.f32 %v1468, %v1664
        %v1688 = vmul.f32 %v1520, %v1664
        %v1713 = vrot.slane %v1665, 2
        %v1714 = vrot.slane %v1666, 2
        %v1715 = vsel %vm1363, %v1713, %v1714
        %v1716 = vrot.slane %v1667, 2
        %v1717 = vsel %vm1363, %v1714, %v1716
        %v1718 = vrot.slane %v1668, 2
        %v1719 = vrot.slane %v1669, 2
        %v1720 = vsel %vm1363, %v1718, %v1719
        %v1721 = vrot.slane %v1670, 2
        %v1722 = vsel %vm1363, %v1719, %v1721
        %v1723 = vrot.slane %v1671, 2
        %v1724 = vrot.slane %v1672, 2
        %v1725 = vsel %vm1363, %v1723, %v1724
        %v1726 = vrot.slane %v1673, 2
        %v1727 = vsel %vm1363, %v1724, %v1726
        %v1728 = vrot.slane %v1674, 2
        %v1729 = vrot.slane %v1675, 2
        %v1730 = vsel %vm1363, %v1728, %v1729
        %v1731 = vrot.slane %v1676, 2
        %v1732 = vsel %vm1363, %v1729, %v1731
        %v1733 = vrot.slane %v1677, 2
        %v1734 = vrot.slane %v1678, 2
        %v1735 = vsel %vm1363, %v1733, %v1734
        %v1736 = vrot.slane %v1679, 2
        %v1737 = vsel %vm1363, %v1734, %v1736
        %v1738 = vrot.slane %v1680, 2
        %v1739 = vrot.slane %v1681, 2
        %v1740 = vsel %vm1363, %v1738, %v1739
        %v1741 = vrot.slane %v1682, 2
        %v1742 = vsel %vm1363, %v1739, %v1741
        %v1743 = vrot.slane %v1683, 2
        %v1744 = vrot.slane %v1684, 2
        %v1745 = vsel %vm1363, %v1743, %v1744
        %v1746 = vrot.slane %v1685, 2
        %v1747 = vsel %vm1363, %v1744, %v1746
        %v1748 = vrot.slane %v1686, 2
        %v1749 = vrot.slane %v1687, 2
        %v1750 = vsel %vm1363, %v1748, %v1749
        %v1751 = vrot.slane %v1688, 2
        %v1752 = vsel %vm1363, %v1749, %v1751
        %v1769 = vadd.f32 %v1629, %v1715
        %v1770 = vadd.f32 %v1630, %v1717
        %v1771 = vadd.f32 %v1631, %v1720
        %v1772 = vadd.f32 %v1632, %v1722
        %v1773 = vadd.f32 %v1633, %v1725
        %v1774 = vadd.f32 %v1634, %v1727
        %v1775 = vadd.f32 %v1635, %v1730
        %v1776 = vadd.f32 %v1636, %v1732
        %v1777 = vadd.f32 %v1637, %v1735
        %v1778 = vadd.f32 %v1638, %v1737
        %v1779 = vadd.f32 %v1639, %v1740
        %v1780 = vadd.f32 %v1640, %v1742
        %v1781 = vadd.f32 %v1641, %v1745
        %v1782 = vadd.f32 %v1642, %v1747
        %v1783 = vadd.f32 %v1643, %v1750
        %v1784 = vadd.f32 %v1644, %v1752
        %s1785 = scalar_lea.vmem [#allocation2], 24
        %v1786 = vld [vmem:[%s1785] sm:$0xf]
        %v1787 = vld [vmem:[%s1785 + $0x4] sm:$0xf]
        %v1788 = vld [vmem:[%s1785 + $0xc] sm:$0xf]
        %v1789 = vld [vmem:[%s1785 + $0x10] sm:$0xf]
        %v1790 = vld [vmem:[%s1785 + $0x18] sm:$0xf]
        %v1791 = vld [vmem:[%s1785 + $0x1c] sm:$0xf]
        %v1792 = vld [vmem:[%s1785 + $0x24] sm:$0xf]
        %v1793 = vld [vmem:[%s1785 + $0x28] sm:$0xf]
        %v1794 = vld [vmem:[%s1785 + $0x30] sm:$0xf]
        %v1795 = vld [vmem:[%s1785 + $0x34] sm:$0xf]
        %v1796 = vld [vmem:[%s1785 + $0x3c] sm:$0xf]
        %v1797 = vld [vmem:[%s1785 + $0x40] sm:$0xf]
        %v1798 = vld [vmem:[%s1785 + $0x48] sm:$0xf]
        %v1799 = vld [vmem:[%s1785 + $0x4c] sm:$0xf]
        %v1800 = vld [vmem:[%s1785 + $0x54] sm:$0xf]
        %v1801 = vld [vmem:[%s1785 + $0x58] sm:$0xf]
        %v1802 = vunpack.c.l.bf16 %v1786
        %v1803 = vunpack.c.l.bf16 %v1787
        %v1804 = vunpack.c.l.bf16 %v1788
        %v1805 = vunpack.c.l.bf16 %v1789
        %v1806 = vunpack.c.l.bf16 %v1790
        %v1807 = vunpack.c.l.bf16 %v1791
        %v1808 = vunpack.c.l.bf16 %v1792
        %v1809 = vunpack.c.l.bf16 %v1793
        %v1810 = vunpack.c.l.bf16 %v1794
        %v1811 = vunpack.c.l.bf16 %v1795
        %v1812 = vunpack.c.l.bf16 %v1796
        %v1813 = vunpack.c.l.bf16 %v1797
        %v1814 = vunpack.c.l.bf16 %v1798
        %v1815 = vunpack.c.l.bf16 %v1799
        %v1816 = vunpack.c.l.bf16 %v1800
        %v1817 = vunpack.c.l.bf16 %v1801
        %v1818 = vlaneseq
        %v1819 = vshrl.u32 %v1818, 7
        %v1820 = vsub.s32 0, %v1819
        %v1821 = vrot.slane %v1078, %v1820
        %v1822 = vmul.f32 %v1802, %v1821
        %v1823 = vmul.f32 %v1803, %v1821
        %v1824 = vmul.f32 %v1804, %v1821
        %v1825 = vmul.f32 %v1805, %v1821
        %v1826 = vmul.f32 %v1806, %v1821
        %v1827 = vmul.f32 %v1807, %v1821
        %v1828 = vmul.f32 %v1808, %v1821
        %v1829 = vmul.f32 %v1809, %v1821
        %v1830 = vmul.f32 %v1810, %v1821
        %v1831 = vmul.f32 %v1811, %v1821
        %v1832 = vmul.f32 %v1812, %v1821
        %v1833 = vmul.f32 %v1813, %v1821
        %v1834 = vmul.f32 %v1814, %v1821
        %v1835 = vmul.f32 %v1815, %v1821
        %v1836 = vmul.f32 %v1816, %v1821
        %v1837 = vmul.f32 %v1817, %v1821
        %v1838 = vadd.f32 %v1769, %v1822
        %v1839 = vadd.f32 %v1770, %v1823
        %v1840 = vadd.f32 %v1771, %v1824
        %v1841 = vadd.f32 %v1772, %v1825
        %v1842 = vadd.f32 %v1773, %v1826
        %v1843 = vadd.f32 %v1774, %v1827
        %v1844 = vadd.f32 %v1775, %v1828
        %v1845 = vadd.f32 %v1776, %v1829
        %v1846 = vadd.f32 %v1777, %v1830
        %v1847 = vadd.f32 %v1778, %v1831
        %v1848 = vadd.f32 %v1779, %v1832
        %v1849 = vadd.f32 %v1780, %v1833
        %v1850 = vadd.f32 %v1781, %v1834
        %v1851 = vadd.f32 %v1782, %v1835
        %v1852 = vadd.f32 %v1783, %v1836
        %v1853 = vadd.f32 %v1784, %v1837
        %v1854 = vld [vmem:[%s1785 + $0x8] sm:$0x1]
        %v1855 = vld [vmem:[%s1785 + $0x14] sm:$0x1]
        %v1856 = vld [vmem:[%s1785 + $0x20] sm:$0x1]
        %v1857 = vld [vmem:[%s1785 + $0x2c] sm:$0x1]
        %v1858 = vld [vmem:[%s1785 + $0x38] sm:$0x1]
        %v1859 = vld [vmem:[%s1785 + $0x44] sm:$0x1]
        %v1860 = vld [vmem:[%s1785 + $0x50] sm:$0x1]
        %v1861 = vld [vmem:[%s1785 + $0x5c] sm:$0x1]
        %v1862 = vunpack.c.l.bf16 %v1854
        %v1863 = vunpack.c.l.bf16 %v1855
        %v1864 = vunpack.c.l.bf16 %v1856
        %v1865 = vunpack.c.l.bf16 %v1857
        %v1866 = vunpack.c.l.bf16 %v1858
        %v1867 = vunpack.c.l.bf16 %v1859
        %v1868 = vunpack.c.l.bf16 %v1860
        %v1869 = vunpack.c.l.bf16 %v1861
        %v1870 = vlaneseq
        %v1871 = vshrl.u32 %v1870, 7
        %v1872 = vsub.s32 1, %v1871
        %v1873 = vrot.slane %v1078, %v1872
        %v1874 = vmul.f32 %v1802, %v1873
        %v1875 = vmul.f32 %v1803, %v1873
        %v1876 = vmul.f32 %v1862, %v1873
        %v1877 = vmul.f32 %v1804, %v1873
        %v1878 = vmul.f32 %v1805, %v1873
        %v1879 = vmul.f32 %v1863, %v1873
        %v1880 = vmul.f32 %v1806, %v1873
        %v1881 = vmul.f32 %v1807, %v1873
        %v1882 = vmul.f32 %v1864, %v1873
        %v1883 = vmul.f32 %v1808, %v1873
        %v1884 = vmul.f32 %v1809, %v1873
        %v1885 = vmul.f32 %v1865, %v1873
        %v1886 = vmul.f32 %v1810, %v1873
        %v1887 = vmul.f32 %v1811, %v1873
        %v1888 = vmul.f32 %v1866, %v1873
        %v1889 = vmul.f32 %v1812, %v1873
        %v1890 = vmul.f32 %v1813, %v1873
        %v1891 = vmul.f32 %v1867, %v1873
        %v1892 = vmul.f32 %v1814, %v1873
        %v1893 = vmul.f32 %v1815, %v1873
        %v1894 = vmul.f32 %v1868, %v1873
        %v1895 = vmul.f32 %v1816, %v1873
        %v1896 = vmul.f32 %v1817, %v1873
        %v1897 = vmul.f32 %v1869, %v1873
        %v1922 = vrot.slane %v1874, 1
        %v1923 = vrot.slane %v1875, 1
        %v1924 = vsel %vm1222, %v1922, %v1923
        %v1925 = vrot.slane %v1876, 1
        %v1926 = vsel %vm1222, %v1923, %v1925
        %v1927 = vrot.slane %v1877, 1
        %v1928 = vrot.slane %v1878, 1
        %v1929 = vsel %vm1222, %v1927, %v1928
        %v1930 = vrot.slane %v1879, 1
        %v1931 = vsel %vm1222, %v1928, %v1930
        %v1932 = vrot.slane %v1880, 1
        %v1933 = vrot.slane %v1881, 1
        %v1934 = vsel %vm1222, %v1932, %v1933
        %v1935 = vrot.slane %v1882, 1
        %v1936 = vsel %vm1222, %v1933, %v1935
        %v1937 = vrot.slane %v1883, 1
        %v1938 = vrot.slane %v1884, 1
        %v1939 = vsel %vm1222, %v1937, %v1938
        %v1940 = vrot.slane %v1885, 1
        %v1941 = vsel %vm1222, %v1938, %v1940
        %v1942 = vrot.slane %v1886, 1
        %v1943 = vrot.slane %v1887, 1
        %v1944 = vsel %vm1222, %v1942, %v1943
        %v1945 = vrot.slane %v1888, 1
        %v1946 = vsel %vm1222, %v1943, %v1945
        %v1947 = vrot.slane %v1889, 1
        %v1948 = vrot.slane %v1890, 1
        %v1949 = vsel %vm1222, %v1947, %v1948
        %v1950 = vrot.slane %v1891, 1
        %v1951 = vsel %vm1222, %v1948, %v1950
        %v1952 = vrot.slane %v1892, 1
        %v1953 = vrot.slane %v1893, 1
        %v1954 = vsel %vm1222, %v1952, %v1953
        %v1955 = vrot.slane %v1894, 1
        %v1956 = vsel %vm1222, %v1953, %v1955
        %v1957 = vrot.slane %v1895, 1
        %v1958 = vrot.slane %v1896, 1
        %v1959 = vsel %vm1222, %v1957, %v1958
        %v1960 = vrot.slane %v1897, 1
        %v1961 = vsel %vm1222, %v1958, %v1960
        %v1978 = vadd.f32 %v1838, %v1924
        %v1979 = vadd.f32 %v1839, %v1926
        %v1980 = vadd.f32 %v1840, %v1929
        %v1981 = vadd.f32 %v1841, %v1931
        %v1982 = vadd.f32 %v1842, %v1934
        %v1983 = vadd.f32 %v1843, %v1936
        %v1984 = vadd.f32 %v1844, %v1939
        %v1985 = vadd.f32 %v1845, %v1941
        %v1986 = vadd.f32 %v1846, %v1944
        %v1987 = vadd.f32 %v1847, %v1946
        %v1988 = vadd.f32 %v1848, %v1949
        %v1989 = vadd.f32 %v1849, %v1951
        %v1990 = vadd.f32 %v1850, %v1954
        %v1991 = vadd.f32 %v1851, %v1956
        %v1992 = vadd.f32 %v1852, %v1959
        %v1993 = vadd.f32 %v1853, %v1961
        %v1994 = vld [vmem:[%s1785] sm:$0xe]
        %v1995 = vld [vmem:[%s1785 + $0xc] sm:$0xe]
        %v1996 = vld [vmem:[%s1785 + $0x18] sm:$0xe]
        %v1997 = vld [vmem:[%s1785 + $0x24] sm:$0xe]
        %v1998 = vld [vmem:[%s1785 + $0x30] sm:$0xe]
        %v1999 = vld [vmem:[%s1785 + $0x3c] sm:$0xe]
        %v2000 = vld [vmem:[%s1785 + $0x48] sm:$0xe]
        %v2001 = vld [vmem:[%s1785 + $0x54] sm:$0xe]
        %v2002 = vunpack.c.l.bf16 %v1994
        %v2003 = vunpack.c.l.bf16 %v1995
        %v2004 = vunpack.c.l.bf16 %v1996
        %v2005 = vunpack.c.l.bf16 %v1997
        %v2006 = vunpack.c.l.bf16 %v1998
        %v2007 = vunpack.c.l.bf16 %v1999
        %v2008 = vunpack.c.l.bf16 %v2000
        %v2009 = vunpack.c.l.bf16 %v2001
        %v2010 = vlaneseq
        %v2011 = vshrl.u32 %v2010, 7
        %v2012 = vsub.s32 2, %v2011
        %v2013 = vrot.slane %v1078, %v2012
        %v2014 = vmul.f32 %v2002, %v2013
        %v2015 = vmul.f32 %v1803, %v2013
        %v2016 = vmul.f32 %v1862, %v2013
        %v2017 = vmul.f32 %v2003, %v2013
        %v2018 = vmul.f32 %v1805, %v2013
        %v2019 = vmul.f32 %v1863, %v2013
        %v2020 = vmul.f32 %v2004, %v2013
        %v2021 = vmul.f32 %v1807, %v2013
        %v2022 = vmul.f32 %v1864, %v2013
        %v2023 = vmul.f32 %v2005, %v2013
        %v2024 = vmul.f32 %v1809, %v2013
        %v2025 = vmul.f32 %v1865, %v2013
        %v2026 = vmul.f32 %v2006, %v2013
        %v2027 = vmul.f32 %v1811, %v2013
        %v2028 = vmul.f32 %v1866, %v2013
        %v2029 = vmul.f32 %v2007, %v2013
        %v2030 = vmul.f32 %v1813, %v2013
        %v2031 = vmul.f32 %v1867, %v2013
        %v2032 = vmul.f32 %v2008, %v2013
        %v2033 = vmul.f32 %v1815, %v2013
        %v2034 = vmul.f32 %v1868, %v2013
        %v2035 = vmul.f32 %v2009, %v2013
        %v2036 = vmul.f32 %v1817, %v2013
        %v2037 = vmul.f32 %v1869, %v2013
        %v2062 = vrot.slane %v2014, 2
        %v2063 = vrot.slane %v2015, 2
        %v2064 = vsel %vm1363, %v2062, %v2063
        %v2065 = vrot.slane %v2016, 2
        %v2066 = vsel %vm1363, %v2063, %v2065
        %v2067 = vrot.slane %v2017, 2
        %v2068 = vrot.slane %v2018, 2
        %v2069 = vsel %vm1363, %v2067, %v2068
        %v2070 = vrot.slane %v2019, 2
        %v2071 = vsel %vm1363, %v2068, %v2070
        %v2072 = vrot.slane %v2020, 2
        %v2073 = vrot.slane %v2021, 2
        %v2074 = vsel %vm1363, %v2072, %v2073
        %v2075 = vrot.slane %v2022, 2
        %v2076 = vsel %vm1363, %v2073, %v2075
        %v2077 = vrot.slane %v2023, 2
        %v2078 = vrot.slane %v2024, 2
        %v2079 = vsel %vm1363, %v2077, %v2078
        %v2080 = vrot.slane %v2025, 2
        %v2081 = vsel %vm1363, %v2078, %v2080
        %v2082 = vrot.slane %v2026, 2
        %v2083 = vrot.slane %v2027, 2
        %v2084 = vsel %vm1363, %v2082, %v2083
        %v2085 = vrot.slane %v2028, 2
        %v2086 = vsel %vm1363, %v2083, %v2085
        %v2087 = vrot.slane %v2029, 2
        %v2088 = vrot.slane %v2030, 2
        %v2089 = vsel %vm1363, %v2087, %v2088
        %v2090 = vrot.slane %v2031, 2
        %v2091 = vsel %vm1363, %v2088, %v2090
        %v2092 = vrot.slane %v2032, 2
        %v2093 = vrot.slane %v2033, 2
        %v2094 = vsel %vm1363, %v2092, %v2093
        %v2095 = vrot.slane %v2034, 2
        %v2096 = vsel %vm1363, %v2093, %v2095
        %v2097 = vrot.slane %v2035, 2
        %v2098 = vrot.slane %v2036, 2
        %v2099 = vsel %vm1363, %v2097, %v2098
        %v2100 = vrot.slane %v2037, 2
        %v2101 = vsel %vm1363, %v2098, %v2100
        %v2118 = vadd.f32 %v1978, %v2064
        %v2119 = vadd.f32 %v1979, %v2066
        %v2120 = vadd.f32 %v1980, %v2069
        %v2121 = vadd.f32 %v1981, %v2071
        %v2122 = vadd.f32 %v1982, %v2074
        %v2123 = vadd.f32 %v1983, %v2076
        %v2124 = vadd.f32 %v1984, %v2079
        %v2125 = vadd.f32 %v1985, %v2081
        %v2126 = vadd.f32 %v1986, %v2084
        %v2127 = vadd.f32 %v1987, %v2086
        %v2128 = vadd.f32 %v1988, %v2089
        %v2129 = vadd.f32 %v1989, %v2091
        %v2130 = vadd.f32 %v1990, %v2094
        %v2131 = vadd.f32 %v1991, %v2096
        %v2132 = vadd.f32 %v1992, %v2099
        %v2133 = vadd.f32 %v1993, %v2101
        %v2134 = vmax.f32 %v2118, 0.0
        %v2135 = vmax.f32 %v2119, 0.0
        %v2136 = vmax.f32 %v2120, 0.0
        %v2137 = vmax.f32 %v2121, 0.0
        %v2138 = vmax.f32 %v2122, 0.0
        %v2139 = vmax.f32 %v2123, 0.0
        %v2140 = vmax.f32 %v2124, 0.0
        %v2141 = vmax.f32 %v2125, 0.0
        %v2142 = vmax.f32 %v2126, 0.0
        %v2143 = vmax.f32 %v2127, 0.0
        %v2144 = vmax.f32 %v2128, 0.0
        %v2145 = vmax.f32 %v2129, 0.0
        %v2146 = vmax.f32 %v2130, 0.0
        %v2147 = vmax.f32 %v2131, 0.0
        %v2148 = vmax.f32 %v2132, 0.0
        %v2149 = vmax.f32 %v2133, 0.0
        %v2150 = vmin.f32 %v2134, 6.0
        %v2151 = vmin.f32 %v2135, 6.0
        %v2152 = vmin.f32 %v2136, 6.0
        %v2153 = vmin.f32 %v2137, 6.0
        %v2154 = vmin.f32 %v2138, 6.0
        %v2155 = vmin.f32 %v2139, 6.0
        %v2156 = vmin.f32 %v2140, 6.0
        %v2157 = vmin.f32 %v2141, 6.0
        %v2158 = vmin.f32 %v2142, 6.0
        %v2159 = vmin.f32 %v2143, 6.0
        %v2160 = vmin.f32 %v2144, 6.0
        %v2161 = vmin.f32 %v2145, 6.0
        %v2162 = vmin.f32 %v2146, 6.0
        %v2163 = vmin.f32 %v2147, 6.0
        %v2164 = vmin.f32 %v2148, 6.0
        %v2165 = vmin.f32 %v2149, 6.0
        %v2166 = vpack.c.bf16 %v2151, %v2150
        %v2167 = vpack.c.bf16 %v2153, %v2152
        %v2168 = vpack.c.bf16 %v2155, %v2154
        %v2169 = vpack.c.bf16 %v2157, %v2156
        %v2170 = vpack.c.bf16 %v2159, %v2158
        %v2171 = vpack.c.bf16 %v2161, %v2160
        %v2172 = vpack.c.bf16 %v2163, %v2162
        %v2173 = vpack.c.bf16 %v2165, %v2164
        %v2174 = vld [vmem:[#allocation12] sm:$0xf]
        %v2175 = vld [vmem:[#allocation12 + $0x4] sm:$0xf]
        %v2176 = vld [vmem:[#allocation12 + $0x8] sm:$0xf]
        %v2177 = vld [vmem:[#allocation12 + $0xc] sm:$0xf]
        %v2178 = vld [vmem:[#allocation12 + $0x10] sm:$0xf]
        %v2179 = vld [vmem:[#allocation12 + $0x14] sm:$0xf]
        %v2180 = vld [vmem:[#allocation12 + $0x18] sm:$0xf]
        %v2181 = vld [vmem:[#allocation12 + $0x1c] sm:$0xf]
        %v2182 = vld [vmem:[#allocation12 + $0x20] sm:$0xf]
        %v2183 = vld [vmem:[#allocation12 + $0x24] sm:$0xf]
        %v2184 = vld [vmem:[#allocation12 + $0x28] sm:$0xf]
        %v2185 = vld [vmem:[#allocation12 + $0x2c] sm:$0xf]
        %v2186 = vld [vmem:[#allocation12 + $0x30] sm:$0xf]
        %v2187 = vld [vmem:[#allocation12 + $0x34] sm:$0xf]
        %v2188 = vld [vmem:[#allocation12 + $0x38] sm:$0xf]
        %v2189 = vld [vmem:[#allocation12 + $0x3c] sm:$0xf]
        %v2190 = vld [vmem:[#allocation14] sm:$0x1]
        %v2192 = vlaneseq
        %v2193 = vshrl.u32 %v2192, 7
        %v2194 = vsub.s32 0, %v2193
        %v2195 = vrot.slane %v2190, %v2194
        %v2213 = vunpack.c.l.b16 %v2174
        %v2214 = vunpack.c.l.b16 %v2175
        %v2215 = vunpack.c.l.b16 %v2176
        %v2216 = vunpack.c.l.b16 %v2177
        %v2217 = vunpack.c.l.b16 %v2178
        %v2218 = vunpack.c.l.b16 %v2179
        %v2219 = vunpack.c.l.b16 %v2180
        %v2220 = vunpack.c.l.b16 %v2181
        %v2221 = vunpack.c.l.b16 %v2182
        %v2222 = vunpack.c.l.b16 %v2183
        %v2223 = vunpack.c.l.b16 %v2184
        %v2224 = vunpack.c.l.b16 %v2185
        %v2225 = vunpack.c.l.b16 %v2186
        %v2226 = vunpack.c.l.b16 %v2187
        %v2227 = vunpack.c.l.b16 %v2188
        %v2228 = vunpack.c.l.b16 %v2189
        %v2229 = vpack.c.b16 %v2214, %v2213
        %v2230 = vpack.c.b16 %v2216, %v2215
        %v2231 = vpack.c.b16 %v2218, %v2217
        %v2232 = vpack.c.b16 %v2220, %v2219
        %v2233 = vpack.c.b16 %v2222, %v2221
        %v2234 = vpack.c.b16 %v2224, %v2223
        %v2235 = vpack.c.b16 %v2226, %v2225
        %v2236 = vpack.c.b16 %v2228, %v2227
        %2245 = vmatprep.subr.bf16.mxu0 0
        %2246 = vmatpush1.bf16.msra.mxu0 %v2229
        %2247 = vmatprep.subr.bf16.mxu0 0
        %2248 = vmatpush1.bf16.msra.mxu0 %v2230
        %2249 = vmatprep.subr.bf16.mxu0 0
        %2250 = vmatpush1.bf16.msra.mxu0 %v2231
        %2251 = vmatprep.subr.bf16.mxu0 0
        %2252 = vmatpush1.bf16.msra.mxu0 %v2232
        %2253 = vmatprep.subr.bf16.mxu0 0
        %2254 = vmatpush1.bf16.msra.mxu0 %v2233
        %2255 = vmatprep.subr.bf16.mxu0 0
        %2256 = vmatpush1.bf16.msra.mxu0 %v2234
        %2257 = vmatprep.subr.bf16.mxu0 0
        %2258 = vmatpush1.bf16.msra.mxu0 %v2235
        %2259 = vmatprep.subr.bf16.mxu0 0
        %2260 = vmatpush1.bf16.msra.mxu0 %v2236
        %2261 = vmatprep.subr.bf16.mxu0 0
        %2262 = vmatpush1.bf16.msra.mxu0 0
        %2263 = vmatprep.subr.bf16.mxu0 0
        %2264 = vmatpush1.bf16.msra.mxu0 0
        %2265 = vmatprep.subr.bf16.mxu0 0
        %2266 = vmatpush1.bf16.msra.mxu0 0
        %2267 = vmatprep.subr.bf16.mxu0 0
        %2268 = vmatpush1.bf16.msra.mxu0 0
        %2269 = vmatprep.subr.bf16.mxu0 0
        %2270 = vmatpush1.bf16.msra.mxu0 0
        %2271 = vmatprep.subr.bf16.mxu0 0
        %2272 = vmatpush1.bf16.msra.mxu0 0
        %2273 = vmatprep.subr.bf16.mxu0 0
        %2274 = vmatpush1.bf16.msra.mxu0 0
        %2275 = vmatprep.subr.bf16.mxu0 0
        %2276 = vmatpush1.bf16.msra.mxu0 0
        %2277 = vmatprep.mubr.bf16.mxu0 0
        %2278 = vmatmul.mubr.bf16.gmra.mrb[0].mxu0 %v2166
        %v2279 = vpop.f32.mrb[0].mxu0
        %v2280 = vadd.f32 %v2195, %v2279
        %v2281 = vpop.f32.mrb[0].mxu0
        %v2282 = vpop.f32.mrb[0].mxu0
        %v2283 = vadd.f32 %v2195, %v2282
        %v2284 = vpop.f32.mrb[0].mxu0
        %2285 = vmatprep.mubr.bf16.mxu0 0
        %2286 = vmatmul.mubr.bf16.gmra.mrb[0].mxu0 %v2167
        %v2287 = vpop.f32.mrb[0].mxu0
        %v2288 = vadd.f32 %v2195, %v2287
        %v2289 = vpop.f32.mrb[0].mxu0
        %v2290 = vpop.f32.mrb[0].mxu0
        %v2291 = vadd.f32 %v2195, %v2290
        %v2292 = vpop.f32.mrb[0].mxu0
        %2293 = vmatprep.mubr.bf16.mxu0 0
        %2294 = vmatmul.mubr.bf16.gmra.mrb[0].mxu0 %v2168
        %v2295 = vpop.f32.mrb[0].mxu0
        %v2296 = vadd.f32 %v2195, %v2295
        %v2297 = vpop.f32.mrb[0].mxu0
        %v2298 = vpop.f32.mrb[0].mxu0
        %v2299 = vadd.f32 %v2195, %v2298
        %v2300 = vpop.f32.mrb[0].mxu0
        %2301 = vmatprep.mubr.bf16.mxu0 0
        %2302 = vmatmul.mubr.bf16.gmra.mrb[0].mxu0 %v2169
        %v2303 = vpop.f32.mrb[0].mxu0
        %v2304 = vadd.f32 %v2195, %v2303
        %v2305 = vpop.f32.mrb[0].mxu0
        %v2306 = vpop.f32.mrb[0].mxu0
        %v2307 = vadd.f32 %v2195, %v2306
        %v2308 = vpop.f32.mrb[0].mxu0
        %2309 = vmatprep.mubr.bf16.mxu0 0
        %2310 = vmatmul.mubr.bf16.gmra.mrb[0].mxu0 %v2170
        %v2311 = vpop.f32.mrb[0].mxu0
        %v2312 = vadd.f32 %v2195, %v2311
        %v2313 = vpop.f32.mrb[0].mxu0
        %v2314 = vpop.f32.mrb[0].mxu0
        %v2315 = vadd.f32 %v2195, %v2314
        %v2316 = vpop.f32.mrb[0].mxu0
        %2317 = vmatprep.mubr.bf16.mxu0 0
        %2318 = vmatmul.mubr.bf16.gmra.mrb[0].mxu0 %v2171
        %v2319 = vpop.f32.mrb[0].mxu0
        %v2320 = vadd.f32 %v2195, %v2319
        %v2321 = vpop.f32.mrb[0].mxu0
        %v2322 = vpop.f32.mrb[0].mxu0
        %v2323 = vadd.f32 %v2195, %v2322
        %v2324 = vpop.f32.mrb[0].mxu0
        %2325 = vmatprep.mubr.bf16.mxu0 0
        %2326 = vmatmul.mubr.bf16.gmra.mrb[0].mxu0 %v2172
        %v2327 = vpop.f32.mrb[0].mxu0
        %v2328 = vadd.f32 %v2195, %v2327
        %v2329 = vpop.f32.mrb[0].mxu0
        %v2330 = vpop.f32.mrb[0].mxu0
        %v2331 = vadd.f32 %v2195, %v2330
        %v2332 = vpop.f32.mrb[0].mxu0
        %2333 = vmatprep.mubr.bf16.mxu0 0
        %2334 = vmatmul.mubr.bf16.gmra.mrb[0].mxu0 %v2173
        %v2335 = vpop.f32.mrb[0].mxu0
        %v2336 = vadd.f32 %v2195, %v2335
        %v2337 = vpop.f32.mrb[0].mxu0
        %v2338 = vpop.f32.mrb[0].mxu0
        %v2339 = vadd.f32 %v2195, %v2338
        %v2340 = vpop.f32.mrb[0].mxu0
        %2341 = vdwg.mxu0
        %v2342 = vunpack.c.l.bf16 %v398
        %v2343 = vunpack.c.l.bf16 %v399
        %v2344 = vunpack.c.l.bf16 %v400
        %v2345 = vunpack.c.l.bf16 %v401
        %v2346 = vunpack.c.l.bf16 %v402
        %v2347 = vunpack.c.l.bf16 %v403
        %v2348 = vunpack.c.l.bf16 %v404
        %v2349 = vunpack.c.l.bf16 %v405
        %v2350 = vunpack.c.l.bf16 %v406
        %v2351 = vunpack.c.l.bf16 %v407
        %v2352 = vunpack.c.l.bf16 %v408
        %v2353 = vunpack.c.l.bf16 %v409
        %v2354 = vunpack.c.l.bf16 %v410
        %v2355 = vunpack.c.l.bf16 %v411
        %v2356 = vunpack.c.l.bf16 %v412
        %v2357 = vunpack.c.l.bf16 %v413
        %v2358 = vadd.f32 %v2280, %v2342
        %v2359 = vadd.f32 %v2283, %v2343
        %v2360 = vadd.f32 %v2288, %v2344
        %v2361 = vadd.f32 %v2291, %v2345
        %v2362 = vadd.f32 %v2296, %v2346
        %v2363 = vadd.f32 %v2299, %v2347
        %v2364 = vadd.f32 %v2304, %v2348
        %v2365 = vadd.f32 %v2307, %v2349
        %v2366 = vadd.f32 %v2312, %v2350
        %v2367 = vadd.f32 %v2315, %v2351
        %v2368 = vadd.f32 %v2320, %v2352
        %v2369 = vadd.f32 %v2323, %v2353
        %v2370 = vadd.f32 %v2328, %v2354
        %v2371 = vadd.f32 %v2331, %v2355
        %v2372 = vadd.f32 %v2336, %v2356
        %v2373 = vadd.f32 %v2339, %v2357
        %v2374 = vpack.c.bf16 %v2359, %v2358
        %v2375 = vpack.c.bf16 %v2361, %v2360
        %v2376 = vpack.c.bf16 %v2363, %v2362
        %v2377 = vpack.c.bf16 %v2365, %v2364
        %v2378 = vpack.c.bf16 %v2367, %v2366
        %v2379 = vpack.c.bf16 %v2369, %v2368
        %v2380 = vpack.c.bf16 %v2371, %v2370
        %v2381 = vpack.c.bf16 %v2373, %v2372
        %v2390 = vunpack.c.l.b16 %v2374
        %v2391 = vunpack.c.h.b16 %v2374
        %v2392 = vunpack.c.l.b16 %v2375
        %v2393 = vunpack.c.h.b16 %v2375
        %v2394 = vunpack.c.l.b16 %v2376
        %v2395 = vunpack.c.h.b16 %v2376
        %v2396 = vunpack.c.l.b16 %v2377
        %v2397 = vunpack.c.h.b16 %v2377
        %v2398 = vunpack.c.l.b16 %v2378
        %v2399 = vunpack.c.h.b16 %v2378
        %v2400 = vunpack.c.l.b16 %v2379
        %v2401 = vunpack.c.h.b16 %v2379
        %v2402 = vunpack.c.l.b16 %v2380
        %v2403 = vunpack.c.h.b16 %v2380
        %v2404 = vunpack.c.l.b16 %v2381
        %v2405 = vunpack.c.h.b16 %v2381
        %v2406 = vpack.c.b16 %v2390, %v2390
        %v2407 = vpack.c.b16 %v2391, %v2391
        %v2408 = vpack.c.b16 %v2392, %v2392
        %v2409 = vpack.c.b16 %v2393, %v2393
        %v2410 = vpack.c.b16 %v2394, %v2394
        %v2411 = vpack.c.b16 %v2395, %v2395
        %v2412 = vpack.c.b16 %v2396, %v2396
        %v2413 = vpack.c.b16 %v2397, %v2397
        %v2414 = vpack.c.b16 %v2398, %v2398
        %v2415 = vpack.c.b16 %v2399, %v2399
        %v2416 = vpack.c.b16 %v2400, %v2400
        %v2417 = vpack.c.b16 %v2401, %v2401
        %v2418 = vpack.c.b16 %v2402, %v2402
        %v2419 = vpack.c.b16 %v2403, %v2403
        %v2420 = vpack.c.b16 %v2404, %v2404
        %v2421 = vpack.c.b16 %v2405, %v2405
        %vm2438 = vcmask 27648
        %2439 = vst.msk [vmem:[%s389] sm:$0xf] %vm2438, %v2406
        %2440 = vst.msk [vmem:[%s389 + $0x4] sm:$0xf] %vm2438, %v2407
        %2441 = vst.msk [vmem:[%s389 + $0x8] sm:$0xf] %vm2438, %v2408
        %2442 = vst.msk [vmem:[%s389 + $0xc] sm:$0xf] %vm2438, %v2409
        %2443 = vst.msk [vmem:[%s389 + $0x10] sm:$0xf] %vm2438, %v2410
        %2444 = vst.msk [vmem:[%s389 + $0x14] sm:$0xf] %vm2438, %v2411
        %2445 = vst.msk [vmem:[%s389 + $0x18] sm:$0xf] %vm2438, %v2412
        %2446 = vst.msk [vmem:[%s389 + $0x1c] sm:$0xf] %vm2438, %v2413
        %2447 = vst.msk [vmem:[%s389 + $0x20] sm:$0xf] %vm2438, %v2414
        %2448 = vst.msk [vmem:[%s389 + $0x24] sm:$0xf] %vm2438, %v2415
        %2449 = vst.msk [vmem:[%s389 + $0x28] sm:$0xf] %vm2438, %v2416
        %2450 = vst.msk [vmem:[%s389 + $0x2c] sm:$0xf] %vm2438, %v2417
        %2451 = vst.msk [vmem:[%s389 + $0x30] sm:$0xf] %vm2438, %v2418
        %2452 = vst.msk [vmem:[%s389 + $0x34] sm:$0xf] %vm2438, %v2419
        %2453 = vst.msk [vmem:[%s389 + $0x38] sm:$0xf] %vm2438, %v2420
        %2454 = vst.msk [vmem:[%s389 + $0x3c] sm:$0xf] %vm2438, %v2421
        %s2455 = sand.u32 %s201, 1
        %s2456 = scalar_lea.sflag [#allocation5], %s2455
        %s2457 = sand.u32 %s201, 1
        %s2458 = smul.addr %s2457, 64
        %s2459 = scalar_lea.vmem [#allocation15], %s2458
        // Predicated region
        $region85: #{tpu_custom_call.1} parent=47 // pred_check
          %p2460 = pneg %p211
        $region86: #{tpu_custom_call.1} parent=47 // pred_check_branch
          %2462 = sbr.rel (%p2460) target = $region88
        $region87: #{tpu_custom_call.1} parent=47 // pred_region
          %s2463 = smul.u32 8, %s32
          %s2465 = ssub.s32 1024, 1024
          %2466 = vsyncadd %s2456, %s2465
          %s2467 = smul.addr %s2463, 2
          %s2468 = smul.addr %s31, 32
          %s2469 = sadd.s32 %s2467, %s2468
          %s2470 = smul.addr %s2469, 64
          %s2471 = scalar_lea.hbm %s7, %s2470
          %s2472 = sshll.u32 %s2459, 4
          %s2473 = int_to_ptr.vmem [resolvable:$true] %s2472
          %2478 = dma.vmem_to_hbm [thread:$0]  %s2473, 1024, %s2471, %s2456, 64, 64, 4
        $region88: #{tpu_custom_call.1} parent=47 // pred_fallthru
          _
      $region48: #{tpu_custom_call.1} parent=5 // pred_fallthru
        _
      %p2479 = scmp.le.s32.totalorder 2, %s22
      // Predicated region
      $region89: #{tpu_custom_call.1} parent=5 // pred_check
        %p2480 = pneg %p2479
      $region90: #{tpu_custom_call.1} parent=5 // pred_check_branch
        %2482 = sbr.rel (%p2480) target = $region92
      $region91: #{tpu_custom_call.1} parent=5 // pred_region
        %s2483 = ssub.s32 %s22, 2
        // Predicated region
        $region93: #{tpu_custom_call.1} parent=91 // pred_check
          %p2484 = pneg %p217
        $region94: #{tpu_custom_call.1} parent=91 // pred_check_branch
          %2486 = sbr.rel (%p2484) target = $region96
        $region95: #{tpu_custom_call.1} parent=91 // pred_region
          %s2487 = sand.u32 %s202, 1
          %s2488 = scalar_lea.sflag [#allocation5], %s2487
          %s2489 = sand.u32 %s202, 1
          %s2490 = smul.addr %s2489, 64
          %s2491 = scalar_lea.vmem [#allocation15], %s2490
          %2492 = dma.done %s2488, 1024
        $region96: #{tpu_custom_call.1} parent=91 // pred_fallthru
          _
      $region92: #{tpu_custom_call.1} parent=5 // pred_fallthru
        _
    $region6: #{tpu_custom_call.1} parent=1 // loop_footer
      %s26 = sadd.s32 1, %s22
    $region7: #{tpu_custom_call.1} parent=1 // loop_footer_branch
      %21 = sbr.rel target = $region3
    $region8: #{tpu_custom_call.1} parent=1 // loop_exit
      _
    %2493 = vsyncpa [#allocation4], 1
    %s2494 = scalar_lea.sflag [#allocation4], 1
    %2495 = vsyncpa %s2494, 1
    %2496 = vsyncpa [#allocation7], 1
    %2497 = vsyncpa [#allocation10], 1
    %2498 = vsyncpa [#allocation13], 1
    %2499 = vsyncpa [#allocation5], 1
    %s2500 = scalar_lea.sflag [#allocation5], 1
    %2501 = vsyncpa %s2500, 1

</llo_original>
